<compile_context>
chip_gen: v5e
topology: v5e:2x2
jax: 0.10.0
libtpu: 0.0.40
codegen_flags: <defaults>
</compile_context>

<pallas_src>
import functools

import jax
import jax.numpy as jnp
from jax import lax
from jax.experimental import pallas as pl
from jax.experimental.pallas import tpu as pltpu

DT = jnp.bfloat16  # MXU operand dtype; all accumulation stays in f32.


def _round_up(a, b):
    return (a + b - 1) // b * b


# -----------------------------------------------------------------------------
# im2col (plain-JAX glue; patch extraction only — bias/ReLU are fused into the
# matmul kernel epilogue).  Inputs are already bf16 so the patch tensor is half
# the bytes of an f32 one and XLA fuses pad+slice+concat into one op.
# -----------------------------------------------------------------------------
def _im2col(x_nhwc, k, stride, pad):
    n, h, w, c = x_nhwc.shape
    xp = jnp.pad(x_nhwc, ((0, 0), (pad, pad), (pad, pad), (0, 0)))
    ho = (h + 2 * pad - k) // stride + 1
    wo = (w + 2 * pad - k) // stride + 1
    cols = []
    for di in range(k):
        for dj in range(k):
            patch = lax.slice(
                xp,
                (0, di, dj, 0),
                (n, di + (ho - 1) * stride + 1, dj + (wo - 1) * stride + 1, c),
                (1, stride, stride, 1),
            )  # (n, ho, wo, c)
            cols.append(patch)
    patches = jnp.concatenate(cols, axis=-1)  # (n, ho, wo, k*k*c)
    return patches.reshape(n * ho * wo, k * k * c), ho, wo


# -----------------------------------------------------------------------------
# Kernel 1: tiled matmul with bias + ReLU fused into the K-epilogue.
#   grid = (M/tm, N/tn, K/tk); K last, "arbitrary"; f32 VMEM accumulator.
# -----------------------------------------------------------------------------
def _mm_bias_act_kernel(x_ref, w_ref, b_ref, o_ref, acc_ref, *, apply_relu):
    k = pl.program_id(2)

    @pl.when(k == 0)
    def _init():
        acc_ref[...] = jnp.zeros_like(acc_ref)

    acc_ref[...] += jnp.dot(x_ref[...], w_ref[...],
                            preferred_element_type=jnp.float32)

    @pl.when(k == pl.num_programs(2) - 1)
    def _finalize():
        y = acc_ref[...] + b_ref[...].astype(jnp.float32)
        if apply_relu:
            y = jnp.maximum(y, 0.0)
        o_ref[...] = y.astype(o_ref.dtype)


def matmul_bias_act(x, w, b, *, apply_relu, out_dtype, keep_padded_cols=False):
    """y = act(x @ w + b). x:(M,K), w:(K,N), b:(N,). bf16 MXU, f32 accumulate.

    If keep_padded_cols, the channel-padded (mult-of-128) output is returned so
    downstream kernels can consume it without a slice/re-pad round trip; the
    padded columns are exactly zero (zero-padded weights and bias).
    """
    m, k = x.shape
    k2, n = w.shape
    assert k == k2

    tm = min(1024, _round_up(m, 128))
    tn = min(256, _round_up(n, 128))
    tk = min(512, _round_up(k, 128))
    mp = _round_up(m, tm)
    np_ = _round_up(n, tn)
    kp = _round_up(k, tk)

    xp = jnp.pad(x.astype(DT), ((0, mp - m), (0, kp - k)))
    wp = jnp.pad(w.astype(DT), ((0, kp - k), (0, np_ - n)))
    bp = jnp.pad(b.astype(jnp.float32).reshape(1, -1), ((0, 0), (0, np_ - n)))

    out = pl.pallas_call(
        functools.partial(_mm_bias_act_kernel, apply_relu=apply_relu),
        out_shape=jax.ShapeDtypeStruct((mp, np_), out_dtype),
        grid_spec=pltpu.PrefetchScalarGridSpec(
            num_scalar_prefetch=0,
            grid=(mp // tm, np_ // tn, kp // tk),
            in_specs=[
                pl.BlockSpec((tm, tk), lambda i, j, kk: (i, kk)),
                pl.BlockSpec((tk, tn), lambda i, j, kk: (kk, j)),
                pl.BlockSpec((1, tn), lambda i, j, kk: (0, j)),
            ],
            out_specs=pl.BlockSpec((tm, tn), lambda i, j, kk: (i, j)),
            scratch_shapes=[pltpu.VMEM((tm, tn), jnp.float32)],
        ),
        compiler_params=pltpu.CompilerParams(
            dimension_semantics=("parallel", "parallel", "arbitrary")),
    )(xp, wp, bp)

    out = out if mp == m else out[:m]
    return out if keep_padded_cols else out[:, :n]


# -----------------------------------------------------------------------------
# Kernel 2: fused 1x1-conv + ReLU + global-average-pool + final FC.
#   grid = (B, S/ts); spatial axis is the reduction ("arbitrary").
#   Pooled sums accumulate into an (8, C3) f32 VMEM scratch with vreg-granular
#   VALU adds; cross-sublane collapse + the tiny FC run once in the last-step
#   epilogue, writing a lane-dense (1, 128) f32 slab.
# -----------------------------------------------------------------------------
def _pw_gap_fc_kernel(x_ref, w3_ref, b3_ref, wf_ref, bf_ref, o_ref, acc_ref, *,
                      s_valid, s_padded, inv_s):
    s = pl.program_id(1)
    n_s = pl.num_programs(1)

    @pl.when(s == 0)
    def _init():
        acc_ref[...] = jnp.zeros_like(acc_ref)

    x = x_ref[0]                                            # (ts, C2p) bf16
    y = jnp.dot(x, w3_ref[...], preferred_element_type=jnp.float32)
    y = jnp.maximum(y + b3_ref[...].astype(jnp.float32), 0.0)   # (ts, C3p) f32

    ts, c3p = y.shape

    def _accum(v):
        # Fold ts rows into groups of 8 sublanes: pure vreg-wise VALU adds; the
        # cross-sublane reduce happens only once, in the finalize step.
        acc_ref[...] += v.reshape(ts // 8, 8, c3p).sum(axis=0)

    if s_padded == s_valid:
        # No spatial padding at all: no mask work anywhere.
        _accum(y)
    else:
        # Only the last spatial tile can hold padded rows.
        @pl.when(s == n_s - 1)
        def _masked():
            row = lax.broadcasted_iota(jnp.int32, (ts, 1), 0) + s * ts
            _accum(jnp.where(row < s_valid, y, 0.0))

        @pl.when(s != n_s - 1)
        def _plain():
            _accum(y)

    @pl.when(s == n_s - 1)
    def _finalize():
        pooled = jnp.sum(acc_ref[...], axis=0, keepdims=True) * inv_s  # (1, C3p)
        emb = jnp.dot(pooled.astype(wf_ref.dtype), wf_ref[...],
                      preferred_element_type=jnp.float32)
        emb = emb + bf_ref[...].astype(jnp.float32)                     # (1, Fp)
        o_ref[...] = emb.reshape(o_ref.shape).astype(o_ref.dtype)


def pointwise_gap_fc(xs, w3, b3, wf, bf):
    """xs:(B,S,C2x) -> (B,F). Fused 1x1conv+ReLU+GAP+FC, f32 output.

    xs may already carry zero-padded channels (C2x >= w3 rows); the padded rows
    of w3 are zero-filled so the math is unchanged and no re-pad copy is needed.
    """
    bsz, s, c2x = xs.shape
    c2w, c3 = w3.shape
    c3b, f = wf.shape
    assert c3 == c3b and c2x >= c2w

    c2p = _round_up(c2x, 128)
    c3p = _round_up(c3, 128)
    fp = _round_up(f, 128)
    ts = min(2048, _round_up(s, 8))
    sp = _round_up(s, ts)

    xsp = xs.astype(DT)
    if (sp, c2p) != (s, c2x):
        xsp = jnp.pad(xsp, ((0, 0), (0, sp - s), (0, c2p - c2x)))
    w3p = jnp.pad(w3.astype(DT), ((0, c2p - c2w), (0, c3p - c3)))
    b3p = jnp.pad(b3.astype(jnp.float32).reshape(1, -1), ((0, 0), (0, c3p - c3)))
    wfp = jnp.pad(wf.astype(DT), ((0, c3p - c3), (0, fp - f)))
    bfp = jnp.pad(bf.astype(jnp.float32).reshape(1, -1), ((0, 0), (0, fp - f)))

    kernel = functools.partial(_pw_gap_fc_kernel,
                               s_valid=s, s_padded=sp, inv_s=1.0 / float(s))

    out = pl.pallas_call(
        kernel,
        out_shape=jax.ShapeDtypeStruct((bsz, 1, fp), jnp.float32),
        grid_spec=pltpu.PrefetchScalarGridSpec(
            num_scalar_prefetch=0,
            grid=(bsz, sp // ts),
            in_specs=[
                pl.BlockSpec((1, ts, c2p), lambda b, ss: (b, ss, 0)),
                pl.BlockSpec((c2p, c3p), lambda b, ss: (0, 0)),
                pl.BlockSpec((1, c3p), lambda b, ss: (0, 0)),
                pl.BlockSpec((c3p, fp), lambda b, ss: (0, 0)),
                pl.BlockSpec((1, fp), lambda b, ss: (0, 0)),
            ],
            out_specs=pl.BlockSpec((1, 1, fp), lambda b, ss: (b, 0, 0)),
            scratch_shapes=[pltpu.VMEM((8, c3p), jnp.float32)],
        ),
        compiler_params=pltpu.CompilerParams(
            dimension_semantics=("parallel", "arbitrary")),
    )(xsp, w3p, b3p, wfp, bfp)
    return out[:, 0, :f]


# -----------------------------------------------------------------------------
# Synthetic FECNet backbone: params + forward (Pallas) + reference (pure JAX).
# -----------------------------------------------------------------------------
C_IN, C1, C2, C3, F_EMB = 3, 32, 64, 128, 16


def init_params(key):
    ks = jax.random.split(key, 8)

    def w(k, shape, fan_in):
        return (jax.random.normal(k, shape, jnp.float32) / jnp.sqrt(fan_in))

    return {
        "w1": w(ks[0], (3 * 3 * C_IN, C1), 3 * 3 * C_IN),
        "b1": 0.05 * jax.random.normal(ks[1], (C1,), jnp.float32),
        "w2": w(ks[2], (3 * 3 * C1, C2), 3 * 3 * C1),
        "b2": 0.05 * jax.random.normal(ks[3], (C2,), jnp.float32),
        "w3": w(ks[4], (C2, C3), C2),
        "b3": 0.05 * jax.random.normal(ks[5], (C3,), jnp.float32),
        "wf": w(ks[6], (C3, F_EMB), C3),
        "bf": 0.05 * jax.random.normal(ks[7], (F_EMB,), jnp.float32),
    }


def fecnet_forward(img_nchw, params):
    """img (N,C,H,W) f32 -> (N,16) f32 embedding. Frozen forward (no grad)."""
    x = jnp.transpose(img_nchw, (0, 2, 3, 1)).astype(DT)          # NHWC, bf16
    n = x.shape[0]

    p, ho, wo = _im2col(x, 3, 1, 1)                               # conv1 3x3 s1
    y = matmul_bias_act(p, params["w1"], params["b1"],
                        apply_relu=True, out_dtype=DT)
    x = y.reshape(n, ho, wo, C1)

    p, ho, wo = _im2col(x, 3, 2, 1)                               # conv2 3x3 s2
    y = matmul_bias_act(p, params["w2"], params["b2"],
                        apply_relu=True, out_dtype=DT,
                        keep_padded_cols=True)                    # (M, 128) — padded
    c2_padded = y.shape[1]                                        # channels stay padded
    xs = y.reshape(n, ho * wo, c2_padded)                         # no slice / re-pad

    emb = pointwise_gap_fc(xs, params["w3"], params["b3"],
                           params["wf"], params["bf"])
    return emb                                                    # (N, 16) f32


def fecnet_reference(img_nchw, params):
    """Pure-JAX reference following the identical bf16/f32 quantization path."""
    x = jnp.transpose(img_nchw, (0, 2, 3, 1)).astype(DT)
    n = x.shape[0]

    def conv(x, w, b, stride):
        p, ho, wo = _im2col(x, 3, stride, 1)
        y = jnp.dot(p.astype(DT), w.astype(DT),
                    preferred_element_type=jnp.float32)
        y = jnp.maximum(y + b[None, :], 0.0).astype(DT)
        return y.reshape(n, ho, wo, -1)

    x = conv(x, params["w1"], params["b1"], 1)
    x = conv(x, params["w2"], params["b2"], 2)
    _, ho, wo, _ = x.shape
    xs = x.reshape(n, ho * wo, C2).astype(DT)
    y = jnp.dot(xs, params["w3"].astype(DT), preferred_element_type=jnp.float32)
    y = jnp.maximum(y + params["b3"][None, None, :], 0.0)
    pooled = jnp.mean(y, axis=1)                                  # (N, C3) f32
    emb = jnp.dot(pooled.astype(DT), params["wf"].astype(DT),
                  preferred_element_type=jnp.float32) + params["bf"][None, :]
    return emb


if __name__ == "__main__":
    key = jax.random.PRNGKey(0)
    k_img, k_par = jax.random.split(key)

    img = jax.random.normal(k_img, (2, 3, 16, 16), jnp.float32)   # small NCHW
    params = init_params(k_par)

    emb = jax.jit(fecnet_forward)(img, params)
    emb = jax.block_until_ready(emb)

    ref = fecnet_reference(img, params)
    ref = jax.block_until_ready(ref)

    assert emb.shape == (2, F_EMB), emb.shape
    max_err = float(jnp.max(jnp.abs(emb - ref)))
    assert max_err < 5e-2, f"Pallas/reference mismatch: max abs err {max_err}"

    print("KERNEL_OK")
</pallas_src>

<mosaic_0001>
module attributes {stable_mosaic.version = 11 : i64} {
  func.func @_mm_bias_act_kernel(%arg0: i32, %arg1: i32, %arg2: i32, %arg3: memref<512x128xbf16, #tpu.memory_space<vmem>>, %arg4: memref<128x128xbf16, #tpu.memory_space<vmem>>, %arg5: memref<1x128xf32, #tpu.memory_space<vmem>>, %arg6: memref<512x128xbf16, #tpu.memory_space<vmem>>, %arg7: memref<512x128xf32, #tpu.memory_space<vmem>>) attributes {dimension_semantics = [#tpu.dimension_semantics<parallel>, #tpu.dimension_semantics<parallel>, #tpu.dimension_semantics<arbitrary>], iteration_bounds = array<i64: 1, 1, 1>, scalar_prefetch = 0 : i64, scratch_operands = 1 : i64, tpu.core_type = #tpu.core_type<tc>, window_params = [{transform_indices = @transform_0, window_bounds = array<i64: 512, 128>}, {transform_indices = @transform_1, window_bounds = array<i64: 128, 128>}, {transform_indices = @transform_2, window_bounds = array<i64: 1, 128>}, {transform_indices = @transform_3, window_bounds = array<i64: 512, 128>}]} {
    %c0_i32 = arith.constant 0 : i32
    %0 = arith.cmpi eq, %arg2, %c0_i32 : i32
    %1 = arith.extui %0 : i1 to i32
    %c0_i32_0 = arith.constant 0 : i32
    %2 = arith.cmpi ne, %1, %c0_i32_0 : i32
    scf.if %2 {
      %cst_10 = arith.constant 0.000000e+00 : f32
      %12 = vector.broadcast %cst_10 : f32 to vector<512x128xf32>
      %c0_11 = arith.constant 0 : index
      %c0_12 = arith.constant 0 : index
      %13 = vector.load %arg7[%c0_11, %c0_12] : memref<512x128xf32, #tpu.memory_space<vmem>>, vector<512x128xf32>
      tpu.vector_store %arg7[%c0_11, %c0_12], %12 {strides = array<i32>} : memref<512x128xf32, #tpu.memory_space<vmem>>, vector<512x128xf32>,
    } else {
    }
    %c0 = arith.constant 0 : index
    %c0_1 = arith.constant 0 : index
    %3 = vector.load %arg7[%c0, %c0_1] : memref<512x128xf32, #tpu.memory_space<vmem>>, vector<512x128xf32>
    %c0_2 = arith.constant 0 : index
    %c0_3 = arith.constant 0 : index
    %4 = vector.load %arg3[%c0_2, %c0_3] : memref<512x128xbf16, #tpu.memory_space<vmem>>, vector<512x128xbf16>
    %c0_4 = arith.constant 0 : index
    %c0_5 = arith.constant 0 : index
    %5 = vector.load %arg4[%c0_4, %c0_5] : memref<128x128xbf16, #tpu.memory_space<vmem>>, vector<128x128xbf16>
    %cst = arith.constant dense<0.000000e+00> : vector<512x128xf32>
    %6 = tpu.matmul %4, %5, %cst {dimension_numbers = #tpu.dot_dimension_numbers<[1], [0], [0], [1], [0, 0, 1, 1], [], []>} : vector<512x128xbf16>, vector<128x128xbf16>, vector<512x128xf32> -> vector<512x128xf32>
    %7 = arith.addf %3, %6 : vector<512x128xf32>
    %c0_6 = arith.constant 0 : index
    %c0_7 = arith.constant 0 : index
    %8 = vector.load %arg7[%c0_6, %c0_7] : memref<512x128xf32, #tpu.memory_space<vmem>>, vector<512x128xf32>
    tpu.vector_store %arg7[%c0_6, %c0_7], %7 {strides = array<i32>} : memref<512x128xf32, #tpu.memory_space<vmem>>, vector<512x128xf32>,
    %c0_i32_8 = arith.constant 0 : i32
    %9 = arith.cmpi eq, %arg2, %c0_i32_8 : i32
    %10 = arith.extui %9 : i1 to i32
    %c0_i32_9 = arith.constant 0 : i32
    %11 = arith.cmpi ne, %10, %c0_i32_9 : i32
    scf.if %11 {
      %c0_10 = arith.constant 0 : index
      %c0_11 = arith.constant 0 : index
      %12 = vector.load %arg7[%c0_10, %c0_11] : memref<512x128xf32, #tpu.memory_space<vmem>>, vector<512x128xf32>
      %c0_12 = arith.constant 0 : index
      %c0_13 = arith.constant 0 : index
      %13 = vector.load %arg5[%c0_12, %c0_13] : memref<1x128xf32, #tpu.memory_space<vmem>>, vector<1x128xf32>
      %14 = vector.broadcast %13 : vector<1x128xf32> to vector<512x128xf32>
      %15 = arith.addf %12, %14 : vector<512x128xf32>
      %cst_14 = arith.constant 0.000000e+00 : f32
      %16 = vector.broadcast %cst_14 : f32 to vector<512x128xf32>
      %17 = arith.maximumf %15, %16 : vector<512x128xf32>
      %18 = arith.truncf %17 : vector<512x128xf32> to vector<512x128xbf16>
      %c0_15 = arith.constant 0 : index
      %c0_16 = arith.constant 0 : index
      %19 = vector.load %arg6[%c0_15, %c0_16] : memref<512x128xbf16, #tpu.memory_space<vmem>>, vector<512x128xbf16>
      tpu.vector_store %arg6[%c0_15, %c0_16], %18 {strides = array<i32>} : memref<512x128xbf16, #tpu.memory_space<vmem>>, vector<512x128xbf16>,
    } else {
    }
    return
  }
  func.func @transform_0(%arg0: i32, %arg1: i32, %arg2: i32) -> (i32, i32) {
    %c0_i32 = arith.constant 0 : i32
    return %arg0, %arg2 : i32, i32
  }
  func.func @transform_1(%arg0: i32, %arg1: i32, %arg2: i32) -> (i32, i32) {
    %c0_i32 = arith.constant 0 : i32
    return %arg2, %arg1 : i32, i32
  }
  func.func @transform_2(%arg0: i32, %arg1: i32, %arg2: i32) -> (i32, i32) {
    %c0_i32 = arith.constant 0 : i32
    %c0_i32_0 = arith.constant 0 : i32
    return %c0_i32, %arg1 : i32, i32
  }
  func.func @transform_3(%arg0: i32, %arg1: i32, %arg2: i32) -> (i32, i32) {
    %c0_i32 = arith.constant 0 : i32
    return %arg0, %arg1 : i32, i32
  }
}

module attributes {stable_mosaic.version = 11 : i64} {
  func.func @_mm_bias_act_kernel(%arg0: i32, %arg1: i32, %arg2: i32, %arg3: memref<128x384xbf16, #tpu.memory_space<vmem>>, %arg4: memref<384x128xbf16, #tpu.memory_space<vmem>>, %arg5: memref<1x128xf32, #tpu.memory_space<vmem>>, %arg6: memref<128x128xbf16, #tpu.memory_space<vmem>>, %arg7: memref<128x128xf32, #tpu.memory_space<vmem>>) attributes {dimension_semantics = [#tpu.dimension_semantics<parallel>, #tpu.dimension_semantics<parallel>, #tpu.dimension_semantics<arbitrary>], iteration_bounds = array<i64: 1, 1, 1>, scalar_prefetch = 0 : i64, scratch_operands = 1 : i64, tpu.core_type = #tpu.core_type<tc>, window_params = [{transform_indices = @transform_0, window_bounds = array<i64: 128, 384>}, {transform_indices = @transform_1, window_bounds = array<i64: 384, 128>}, {transform_indices = @transform_2, window_bounds = array<i64: 1, 128>}, {transform_indices = @transform_3, window_bounds = array<i64: 128, 128>}]} {
    %c0_i32 = arith.constant 0 : i32
    %0 = arith.cmpi eq, %arg2, %c0_i32 : i32
    %1 = arith.extui %0 : i1 to i32
    %c0_i32_0 = arith.constant 0 : i32
    %2 = arith.cmpi ne, %1, %c0_i32_0 : i32
    scf.if %2 {
      %cst_10 = arith.constant 0.000000e+00 : f32
      %12 = vector.broadcast %cst_10 : f32 to vector<128x128xf32>
      %c0_11 = arith.constant 0 : index
      %c0_12 = arith.constant 0 : index
      %13 = vector.load %arg7[%c0_11, %c0_12] : memref<128x128xf32, #tpu.memory_space<vmem>>, vector<128x128xf32>
      tpu.vector_store %arg7[%c0_11, %c0_12], %12 {strides = array<i32>} : memref<128x128xf32, #tpu.memory_space<vmem>>, vector<128x128xf32>,
    } else {
    }
    %c0 = arith.constant 0 : index
    %c0_1 = arith.constant 0 : index
    %3 = vector.load %arg7[%c0, %c0_1] : memref<128x128xf32, #tpu.memory_space<vmem>>, vector<128x128xf32>
    %c0_2 = arith.constant 0 : index
    %c0_3 = arith.constant 0 : index
    %4 = vector.load %arg3[%c0_2, %c0_3] : memref<128x384xbf16, #tpu.memory_space<vmem>>, vector<128x384xbf16>
    %c0_4 = arith.constant 0 : index
    %c0_5 = arith.constant 0 : index
    %5 = vector.load %arg4[%c0_4, %c0_5] : memref<384x128xbf16, #tpu.memory_space<vmem>>, vector<384x128xbf16>
    %cst = arith.constant dense<0.000000e+00> : vector<128x128xf32>
    %6 = tpu.matmul %4, %5, %cst {dimension_numbers = #tpu.dot_dimension_numbers<[1], [0], [0], [1], [0, 0, 1, 1], [], []>} : vector<128x384xbf16>, vector<384x128xbf16>, vector<128x128xf32> -> vector<128x128xf32>
    %7 = arith.addf %3, %6 : vector<128x128xf32>
    %c0_6 = arith.constant 0 : index
    %c0_7 = arith.constant 0 : index
    %8 = vector.load %arg7[%c0_6, %c0_7] : memref<128x128xf32, #tpu.memory_space<vmem>>, vector<128x128xf32>
    tpu.vector_store %arg7[%c0_6, %c0_7], %7 {strides = array<i32>} : memref<128x128xf32, #tpu.memory_space<vmem>>, vector<128x128xf32>,
    %c0_i32_8 = arith.constant 0 : i32
    %9 = arith.cmpi eq, %arg2, %c0_i32_8 : i32
    %10 = arith.extui %9 : i1 to i32
    %c0_i32_9 = arith.constant 0 : i32
    %11 = arith.cmpi ne, %10, %c0_i32_9 : i32
    scf.if %11 {
      %c0_10 = arith.constant 0 : index
      %c0_11 = arith.constant 0 : index
      %12 = vector.load %arg7[%c0_10, %c0_11] : memref<128x128xf32, #tpu.memory_space<vmem>>, vector<128x128xf32>
      %c0_12 = arith.constant 0 : index
      %c0_13 = arith.constant 0 : index
      %13 = vector.load %arg5[%c0_12, %c0_13] : memref<1x128xf32, #tpu.memory_space<vmem>>, vector<1x128xf32>
      %14 = vector.broadcast %13 : vector<1x128xf32> to vector<128x128xf32>
      %15 = arith.addf %12, %14 : vector<128x128xf32>
      %cst_14 = arith.constant 0.000000e+00 : f32
      %16 = vector.broadcast %cst_14 : f32 to vector<128x128xf32>
      %17 = arith.maximumf %15, %16 : vector<128x128xf32>
      %18 = arith.truncf %17 : vector<128x128xf32> to vector<128x128xbf16>
      %c0_15 = arith.constant 0 : index
      %c0_16 = arith.constant 0 : index
      %19 = vector.load %arg6[%c0_15, %c0_16] : memref<128x128xbf16, #tpu.memory_space<vmem>>, vector<128x128xbf16>
      tpu.vector_store %arg6[%c0_15, %c0_16], %18 {strides = array<i32>} : memref<128x128xbf16, #tpu.memory_space<vmem>>, vector<128x128xbf16>,
    } else {
    }
    return
  }
  func.func @transform_0(%arg0: i32, %arg1: i32, %arg2: i32) -> (i32, i32) {
    %c0_i32 = arith.constant 0 : i32
    return %arg0, %arg2 : i32, i32
  }
  func.func @transform_1(%arg0: i32, %arg1: i32, %arg2: i32) -> (i32, i32) {
    %c0_i32 = arith.constant 0 : i32
    return %arg2, %arg1 : i32, i32
  }
  func.func @transform_2(%arg0: i32, %arg1: i32, %arg2: i32) -> (i32, i32) {
    %c0_i32 = arith.constant 0 : i32
    %c0_i32_0 = arith.constant 0 : i32
    return %c0_i32, %arg1 : i32, i32
  }
  func.func @transform_3(%arg0: i32, %arg1: i32, %arg2: i32) -> (i32, i32) {
    %c0_i32 = arith.constant 0 : i32
    return %arg0, %arg1 : i32, i32
  }
}

module attributes {stable_mosaic.version = 11 : i64} {
  func.func @_pw_gap_fc_kernel(%arg0: i32, %arg1: i32, %arg2: memref<1x64x128xbf16, #tpu.memory_space<vmem>>, %arg3: memref<128x128xbf16, #tpu.memory_space<vmem>>, %arg4: memref<1x128xf32, #tpu.memory_space<vmem>>, %arg5: memref<128x128xbf16, #tpu.memory_space<vmem>>, %arg6: memref<1x128xf32, #tpu.memory_space<vmem>>, %arg7: memref<1x1x128xf32, #tpu.memory_space<vmem>>, %arg8: memref<8x128xf32, #tpu.memory_space<vmem>>) attributes {dimension_semantics = [#tpu.dimension_semantics<parallel>, #tpu.dimension_semantics<arbitrary>], iteration_bounds = array<i64: 2, 1>, scalar_prefetch = 0 : i64, scratch_operands = 1 : i64, tpu.core_type = #tpu.core_type<tc>, window_params = [{transform_indices = @transform_0, window_bounds = array<i64: 1, 64, 128>}, {pipeline_mode = #tpu.pipeline_mode<synchronous>, transform_indices = @transform_1, window_bounds = array<i64: 128, 128>}, {pipeline_mode = #tpu.pipeline_mode<synchronous>, transform_indices = @transform_2, window_bounds = array<i64: 1, 128>}, {pipeline_mode = #tpu.pipeline_mode<synchronous>, transform_indices = @transform_3, window_bounds = array<i64: 128, 128>}, {pipeline_mode = #tpu.pipeline_mode<synchronous>, transform_indices = @transform_4, window_bounds = array<i64: 1, 128>}, {transform_indices = @transform_5, window_bounds = array<i64: 1, 1, 128>}]} {
    %c0_i32 = arith.constant 0 : i32
    %0 = arith.cmpi eq, %arg1, %c0_i32 : i32
    %1 = arith.extui %0 : i1 to i32
    %c0_i32_0 = arith.constant 0 : i32
    %2 = arith.cmpi ne, %1, %c0_i32_0 : i32
    scf.if %2 {
      %cst_15 = arith.constant 0.000000e+00 : f32
      %20 = vector.broadcast %cst_15 : f32 to vector<8x128xf32>
      %c0_16 = arith.constant 0 : index
      %c0_17 = arith.constant 0 : index
      %21 = vector.load %arg8[%c0_16, %c0_17] : memref<8x128xf32, #tpu.memory_space<vmem>>, vector<8x128xf32>
      tpu.vector_store %arg8[%c0_16, %c0_17], %20 {strides = array<i32>} : memref<8x128xf32, #tpu.memory_space<vmem>>, vector<8x128xf32>,
    } else {
    }
    %c0 = arith.constant 0 : index
    %c0_1 = arith.constant 0 : index
    %c0_2 = arith.constant 0 : index
    %3 = vector.load %arg2[%c0, %c0_1, %c0_2] : memref<1x64x128xbf16, #tpu.memory_space<vmem>>, vector<1x64x128xbf16>
    %4 = vector.shape_cast %3 : vector<1x64x128xbf16> to vector<64x128xbf16>
    %c0_3 = arith.constant 0 : index
    %c0_4 = arith.constant 0 : index
    %5 = vector.load %arg3[%c0_3, %c0_4] : memref<128x128xbf16, #tpu.memory_space<vmem>>, vector<128x128xbf16>
    %cst = arith.constant dense<0.000000e+00> : vector<64x128xf32>
    %6 = tpu.matmul %4, %5, %cst {dimension_numbers = #tpu.dot_dimension_numbers<[1], [0], [0], [1], [0, 0, 1, 1], [], []>} : vector<64x128xbf16>, vector<128x128xbf16>, vector<64x128xf32> -> vector<64x128xf32>
    %c0_5 = arith.constant 0 : index
    %c0_6 = arith.constant 0 : index
    %7 = vector.load %arg4[%c0_5, %c0_6] : memref<1x128xf32, #tpu.memory_space<vmem>>, vector<1x128xf32>
    %8 = vector.broadcast %7 : vector<1x128xf32> to vector<64x128xf32>
    %9 = arith.addf %6, %8 : vector<64x128xf32>
    %cst_7 = arith.constant 0.000000e+00 : f32
    %10 = vector.broadcast %cst_7 : f32 to vector<64x128xf32>
    %11 = arith.maximumf %9, %10 : vector<64x128xf32>
    %c0_8 = arith.constant 0 : index
    %c0_9 = arith.constant 0 : index
    %12 = vector.load %arg8[%c0_8, %c0_9] : memref<8x128xf32, #tpu.memory_space<vmem>>, vector<8x128xf32>
    %13 = vector.shape_cast %11 : vector<64x128xf32> to vector<8x8x128xf32>
    %cst_10 = arith.constant dense<0.000000e+00> : vector<8x128xf32>
    %14 = vector.multi_reduction <add>, %13, %cst_10 [0] : vector<8x8x128xf32> to vector<8x128xf32>
    %15 = arith.addf %12, %14 : vector<8x128xf32>
    %c0_11 = arith.constant 0 : index
    %c0_12 = arith.constant 0 : index
    %16 = vector.load %arg8[%c0_11, %c0_12] : memref<8x128xf32, #tpu.memory_space<vmem>>, vector<8x128xf32>
    tpu.vector_store %arg8[%c0_11, %c0_12], %15 {strides = array<i32>} : memref<8x128xf32, #tpu.memory_space<vmem>>, vector<8x128xf32>,
    %c0_i32_13 = arith.constant 0 : i32
    %17 = arith.cmpi eq, %arg1, %c0_i32_13 : i32
    %18 = arith.extui %17 : i1 to i32
    %c0_i32_14 = arith.constant 0 : i32
    %19 = arith.cmpi ne, %18, %c0_i32_14 : i32
    scf.if %19 {
      %c0_15 = arith.constant 0 : index
      %c0_16 = arith.constant 0 : index
      %20 = vector.load %arg8[%c0_15, %c0_16] : memref<8x128xf32, #tpu.memory_space<vmem>>, vector<8x128xf32>
      %cst_17 = arith.constant dense<0.000000e+00> : vector<128xf32>
      %21 = vector.multi_reduction <add>, %20, %cst_17 [0] : vector<8x128xf32> to vector<128xf32>
      %22 = vector.shape_cast %21 : vector<128xf32> to vector<1x128xf32>
      %cst_18 = arith.constant 1.562500e-02 : f32
      %23 = vector.broadcast %cst_18 : f32 to vector<1x128xf32>
      %24 = arith.mulf %22, %23 : vector<1x128xf32>
      %25 = arith.truncf %24 : vector<1x128xf32> to vector<1x128xbf16>
      %c0_19 = arith.constant 0 : index
      %c0_20 = arith.constant 0 : index
      %26 = vector.load %arg5[%c0_19, %c0_20] : memref<128x128xbf16, #tpu.memory_space<vmem>>, vector<128x128xbf16>
      %cst_21 = arith.constant dense<0.000000e+00> : vector<1x128xf32>
      %27 = tpu.matmul %25, %26, %cst_21 {dimension_numbers = #tpu.dot_dimension_numbers<[1], [0], [0], [1], [0, 0, 1, 1], [], []>} : vector<1x128xbf16>, vector<128x128xbf16>, vector<1x128xf32> -> vector<1x128xf32>
      %c0_22 = arith.constant 0 : index
      %c0_23 = arith.constant 0 : index
      %28 = vector.load %arg6[%c0_22, %c0_23] : memref<1x128xf32, #tpu.memory_space<vmem>>, vector<1x128xf32>
      %29 = arith.addf %27, %28 : vector<1x128xf32>
      %30 = vector.shape_cast %29 : vector<1x128xf32> to vector<1x1x128xf32>
      %c0_24 = arith.constant 0 : index
      %c0_25 = arith.constant 0 : index
      %c0_26 = arith.constant 0 : index
      %31 = vector.load %arg7[%c0_24, %c0_25, %c0_26] : memref<1x1x128xf32, #tpu.memory_space<vmem>>, vector<1x1x128xf32>
      tpu.vector_store %arg7[%c0_24, %c0_25, %c0_26], %30 {strides = array<i32>} : memref<1x1x128xf32, #tpu.memory_space<vmem>>, vector<1x1x128xf32>,
    } else {
    }
    return
  }
  func.func @transform_0(%arg0: i32, %arg1: i32) -> (i32, i32, i32) {
    %c0_i32 = arith.constant 0 : i32
    %c0_i32_0 = arith.constant 0 : i32
    return %arg0, %arg1, %c0_i32 : i32, i32, i32
  }
  func.func @transform_1(%arg0: i32, %arg1: i32) -> (i32, i32) {
    %c0_i32 = arith.constant 0 : i32
    %c0_i32_0 = arith.constant 0 : i32
    %c0_i32_1 = arith.constant 0 : i32
    return %c0_i32, %c0_i32_0 : i32, i32
  }
  func.func @transform_2(%arg0: i32, %arg1: i32) -> (i32, i32) {
    %c0_i32 = arith.constant 0 : i32
    %c0_i32_0 = arith.constant 0 : i32
    %c0_i32_1 = arith.constant 0 : i32
    return %c0_i32, %c0_i32_0 : i32, i32
  }
  func.func @transform_3(%arg0: i32, %arg1: i32) -> (i32, i32) {
    %c0_i32 = arith.constant 0 : i32
    %c0_i32_0 = arith.constant 0 : i32
    %c0_i32_1 = arith.constant 0 : i32
    return %c0_i32, %c0_i32_0 : i32, i32
  }
  func.func @transform_4(%arg0: i32, %arg1: i32) -> (i32, i32) {
    %c0_i32 = arith.constant 0 : i32
    %c0_i32_0 = arith.constant 0 : i32
    %c0_i32_1 = arith.constant 0 : i32
    return %c0_i32, %c0_i32_0 : i32, i32
  }
  func.func @transform_5(%arg0: i32, %arg1: i32) -> (i32, i32, i32) {
    %c0_i32 = arith.constant 0 : i32
    %c0_i32_0 = arith.constant 0 : i32
    %c0_i32_1 = arith.constant 0 : i32
    return %arg0, %c0_i32, %c0_i32_0 : i32, i32, i32
  }
}

</mosaic_0001>

<llo_original>
// kernel: fecnet_forward.3
$region0: #{fecnet_forward.3}
  #allocation0 [shape = 'u32[]', space=smem, size = 0x4, offset = 0x4, fixed_abs, tag = 'smem constant byte address 0x4 - core index']
  #allocation1 [shape = 'u32[72,128]{1,0:T(1,128)}', space=vmem, size = 0x9000, scoped, tag = 'internal scratch']
  #allocation2 [shape = 'f32[512,128]{1,0:T(8,128)}', space=vmem, size = 0x40000, scoped, tag = 'scratch operand']
  %s0 = inlined_call_operand.vmem [shape: bf16[512,128], index: 0, kind: input, shape index: {}]
  %s1 = inlined_call_operand.vmem [shape: bf16[128,128], index: 1, kind: input, shape index: {}]
  %s2 = inlined_call_operand.vmem [shape: f32[1,128], index: 2, kind: input, shape index: {}]
  %s3 = inlined_call_operand.vmem [shape: bf16[512,128], index: 3, kind: output, shape index: {}]
  %s4 = sld [smem:[#allocation0]]
  $region30: #{fecnet_forward.3} parent=0
    _
  %s6 = ssub.s32 1, %s4
  %s7 = scalar_select 0, %s6, %s4
  // Predicated region
  $region2: #{fecnet_forward.3} parent=0 // pred_check
    _
  $region3: #{fecnet_forward.3} parent=0 // pred_check_branch
    %9 = sbr.rel (0) target = $region5
  $region4: #{fecnet_forward.3} parent=0 // pred_region
    _
  $region5: #{fecnet_forward.3} parent=0 // pred_fallthru
    _
  // Predicated region
  $region6: #{fecnet_forward.3} parent=0 // pred_check
    _
  $region7: #{fecnet_forward.3} parent=0 // pred_check_branch
    %11 = sbr.rel (0) target = $region9
  $region8: #{fecnet_forward.3} parent=0 // pred_region
    _
  $region9: #{fecnet_forward.3} parent=0 // pred_fallthru
    _
  // Predicated region
  $region10: #{fecnet_forward.3} parent=0 // pred_check
    _
  $region11: #{fecnet_forward.3} parent=0 // pred_check_branch
    %13 = sbr.rel (0) target = $region13
  $region12: #{fecnet_forward.3} parent=0 // pred_region
    _
  $region13: #{fecnet_forward.3} parent=0 // pred_fallthru
    _
  %p14 = scmp.eq.s32.totalorder 0, 0
  // Predicated region
  $region14: #{fecnet_forward.3} parent=0 // pred_check
    %p15 = pneg %p14
  $region15: #{fecnet_forward.3} parent=0 // pred_check_branch
    %17 = sbr.rel (%p15) target = $region17
  $region16: #{fecnet_forward.3} parent=0 // pred_region
    %18 = vst [vmem:[#allocation2] sm:$0xff] 0.0
    %19 = vst [vmem:[#allocation2 + $0x8] sm:$0xff] 0.0
    %20 = vst [vmem:[#allocation2 + $0x10] sm:$0xff] 0.0
    %21 = vst [vmem:[#allocation2 + $0x18] sm:$0xff] 0.0
    %22 = vst [vmem:[#allocation2 + $0x20] sm:$0xff] 0.0
    %23 = vst [vmem:[#allocation2 + $0x28] sm:$0xff] 0.0
    %24 = vst [vmem:[#allocation2 + $0x30] sm:$0xff] 0.0
    %25 = vst [vmem:[#allocation2 + $0x38] sm:$0xff] 0.0
    %26 = vst [vmem:[#allocation2 + $0x40] sm:$0xff] 0.0
    %27 = vst [vmem:[#allocation2 + $0x48] sm:$0xff] 0.0
    %28 = vst [vmem:[#allocation2 + $0x50] sm:$0xff] 0.0
    %29 = vst [vmem:[#allocation2 + $0x58] sm:$0xff] 0.0
    %30 = vst [vmem:[#allocation2 + $0x60] sm:$0xff] 0.0
    %31 = vst [vmem:[#allocation2 + $0x68] sm:$0xff] 0.0
    %32 = vst [vmem:[#allocation2 + $0x70] sm:$0xff] 0.0
    %33 = vst [vmem:[#allocation2 + $0x78] sm:$0xff] 0.0
    %34 = vst [vmem:[#allocation2 + $0x80] sm:$0xff] 0.0
    %35 = vst [vmem:[#allocation2 + $0x88] sm:$0xff] 0.0
    %36 = vst [vmem:[#allocation2 + $0x90] sm:$0xff] 0.0
    %37 = vst [vmem:[#allocation2 + $0x98] sm:$0xff] 0.0
    %38 = vst [vmem:[#allocation2 + $0xa0] sm:$0xff] 0.0
    %39 = vst [vmem:[#allocation2 + $0xa8] sm:$0xff] 0.0
    %40 = vst [vmem:[#allocation2 + $0xb0] sm:$0xff] 0.0
    %41 = vst [vmem:[#allocation2 + $0xb8] sm:$0xff] 0.0
    %42 = vst [vmem:[#allocation2 + $0xc0] sm:$0xff] 0.0
    %43 = vst [vmem:[#allocation2 + $0xc8] sm:$0xff] 0.0
    %44 = vst [vmem:[#allocation2 + $0xd0] sm:$0xff] 0.0
    %45 = vst [vmem:[#allocation2 + $0xd8] sm:$0xff] 0.0
    %46 = vst [vmem:[#allocation2 + $0xe0] sm:$0xff] 0.0
    %47 = vst [vmem:[#allocation2 + $0xe8] sm:$0xff] 0.0
    %48 = vst [vmem:[#allocation2 + $0xf0] sm:$0xff] 0.0
    %49 = vst [vmem:[#allocation2 + $0xf8] sm:$0xff] 0.0
    %50 = vst [vmem:[#allocation2 + $0x100] sm:$0xff] 0.0
    %51 = vst [vmem:[#allocation2 + $0x108] sm:$0xff] 0.0
    %52 = vst [vmem:[#allocation2 + $0x110] sm:$0xff] 0.0
    %53 = vst [vmem:[#allocation2 + $0x118] sm:$0xff] 0.0
    %54 = vst [vmem:[#allocation2 + $0x120] sm:$0xff] 0.0
    %55 = vst [vmem:[#allocation2 + $0x128] sm:$0xff] 0.0
    %56 = vst [vmem:[#allocation2 + $0x130] sm:$0xff] 0.0
    %57 = vst [vmem:[#allocation2 + $0x138] sm:$0xff] 0.0
    %58 = vst [vmem:[#allocation2 + $0x140] sm:$0xff] 0.0
    %59 = vst [vmem:[#allocation2 + $0x148] sm:$0xff] 0.0
    %60 = vst [vmem:[#allocation2 + $0x150] sm:$0xff] 0.0
    %61 = vst [vmem:[#allocation2 + $0x158] sm:$0xff] 0.0
    %62 = vst [vmem:[#allocation2 + $0x160] sm:$0xff] 0.0
    %63 = vst [vmem:[#allocation2 + $0x168] sm:$0xff] 0.0
    %64 = vst [vmem:[#allocation2 + $0x170] sm:$0xff] 0.0
    %65 = vst [vmem:[#allocation2 + $0x178] sm:$0xff] 0.0
    %66 = vst [vmem:[#allocation2 + $0x180] sm:$0xff] 0.0
    %67 = vst [vmem:[#allocation2 + $0x188] sm:$0xff] 0.0
    %68 = vst [vmem:[#allocation2 + $0x190] sm:$0xff] 0.0
    %69 = vst [vmem:[#allocation2 + $0x198] sm:$0xff] 0.0
    %70 = vst [vmem:[#allocation2 + $0x1a0] sm:$0xff] 0.0
    %71 = vst [vmem:[#allocation2 + $0x1a8] sm:$0xff] 0.0
    %72 = vst [vmem:[#allocation2 + $0x1b0] sm:$0xff] 0.0
    %73 = vst [vmem:[#allocation2 + $0x1b8] sm:$0xff] 0.0
    %74 = vst [vmem:[#allocation2 + $0x1c0] sm:$0xff] 0.0
    %75 = vst [vmem:[#allocation2 + $0x1c8] sm:$0xff] 0.0
    %76 = vst [vmem:[#allocation2 + $0x1d0] sm:$0xff] 0.0
    %77 = vst [vmem:[#allocation2 + $0x1d8] sm:$0xff] 0.0
    %78 = vst [vmem:[#allocation2 + $0x1e0] sm:$0xff] 0.0
    %79 = vst [vmem:[#allocation2 + $0x1e8] sm:$0xff] 0.0
    %80 = vst [vmem:[#allocation2 + $0x1f0] sm:$0xff] 0.0
    %81 = vst [vmem:[#allocation2 + $0x1f8] sm:$0xff] 0.0
  $region17: #{fecnet_forward.3} parent=0 // pred_fallthru
    _
  %v82 = vld [vmem:[#allocation2] sm:$0xff]
  %v83 = vld [vmem:[#allocation2 + $0x8] sm:$0xff]
  %v84 = vld [vmem:[#allocation2 + $0x10] sm:$0xff]
  %v85 = vld [vmem:[#allocation2 + $0x18] sm:$0xff]
  %v86 = vld [vmem:[#allocation2 + $0x20] sm:$0xff]
  %v87 = vld [vmem:[#allocation2 + $0x28] sm:$0xff]
  %v88 = vld [vmem:[#allocation2 + $0x30] sm:$0xff]
  %v89 = vld [vmem:[#allocation2 + $0x38] sm:$0xff]
  %v90 = vld [vmem:[#allocation2 + $0x40] sm:$0xff]
  %v91 = vld [vmem:[#allocation2 + $0x48] sm:$0xff]
  %v92 = vld [vmem:[#allocation2 + $0x50] sm:$0xff]
  %v93 = vld [vmem:[#allocation2 + $0x58] sm:$0xff]
  %v94 = vld [vmem:[#allocation2 + $0x60] sm:$0xff]
  %v95 = vld [vmem:[#allocation2 + $0x68] sm:$0xff]
  %v96 = vld [vmem:[#allocation2 + $0x70] sm:$0xff]
  %v97 = vld [vmem:[#allocation2 + $0x78] sm:$0xff]
  %v98 = vld [vmem:[#allocation2 + $0x80] sm:$0xff]
  %v99 = vld [vmem:[#allocation2 + $0x88] sm:$0xff]
  %v100 = vld [vmem:[#allocation2 + $0x90] sm:$0xff]
  %v101 = vld [vmem:[#allocation2 + $0x98] sm:$0xff]
  %v102 = vld [vmem:[#allocation2 + $0xa0] sm:$0xff]
  %v103 = vld [vmem:[#allocation2 + $0xa8] sm:$0xff]
  %v104 = vld [vmem:[#allocation2 + $0xb0] sm:$0xff]
  %v105 = vld [vmem:[#allocation2 + $0xb8] sm:$0xff]
  %v106 = vld [vmem:[#allocation2 + $0xc0] sm:$0xff]
  %v107 = vld [vmem:[#allocation2 + $0xc8] sm:$0xff]
  %v108 = vld [vmem:[#allocation2 + $0xd0] sm:$0xff]
  %v109 = vld [vmem:[#allocation2 + $0xd8] sm:$0xff]
  %v110 = vld [vmem:[#allocation2 + $0xe0] sm:$0xff]
  %v111 = vld [vmem:[#allocation2 + $0xe8] sm:$0xff]
  %v112 = vld [vmem:[#allocation2 + $0xf0] sm:$0xff]
  %v113 = vld [vmem:[#allocation2 + $0xf8] sm:$0xff]
  %v114 = vld [vmem:[#allocation2 + $0x100] sm:$0xff]
  %v115 = vld [vmem:[#allocation2 + $0x108] sm:$0xff]
  %v116 = vld [vmem:[#allocation2 + $0x110] sm:$0xff]
  %v117 = vld [vmem:[#allocation2 + $0x118] sm:$0xff]
  %v118 = vld [vmem:[#allocation2 + $0x120] sm:$0xff]
  %v119 = vld [vmem:[#allocation2 + $0x128] sm:$0xff]
  %v120 = vld [vmem:[#allocation2 + $0x130] sm:$0xff]
  %v121 = vld [vmem:[#allocation2 + $0x138] sm:$0xff]
  %v122 = vld [vmem:[#allocation2 + $0x140] sm:$0xff]
  %v123 = vld [vmem:[#allocation2 + $0x148] sm:$0xff]
  %v124 = vld [vmem:[#allocation2 + $0x150] sm:$0xff]
  %v125 = vld [vmem:[#allocation2 + $0x158] sm:$0xff]
  %v126 = vld [vmem:[#allocation2 + $0x160] sm:$0xff]
  %v127 = vld [vmem:[#allocation2 + $0x168] sm:$0xff]
  %v128 = vld [vmem:[#allocation2 + $0x170] sm:$0xff]
  %v129 = vld [vmem:[#allocation2 + $0x178] sm:$0xff]
  %v130 = vld [vmem:[#allocation2 + $0x180] sm:$0xff]
  %v131 = vld [vmem:[#allocation2 + $0x188] sm:$0xff]
  %v132 = vld [vmem:[#allocation2 + $0x190] sm:$0xff]
  %v133 = vld [vmem:[#allocation2 + $0x198] sm:$0xff]
  %v134 = vld [vmem:[#allocation2 + $0x1a0] sm:$0xff]
  %v135 = vld [vmem:[#allocation2 + $0x1a8] sm:$0xff]
  %v136 = vld [vmem:[#allocation2 + $0x1b0] sm:$0xff]
  %v137 = vld [vmem:[#allocation2 + $0x1b8] sm:$0xff]
  %v138 = vld [vmem:[#allocation2 + $0x1c0] sm:$0xff]
  %v139 = vld [vmem:[#allocation2 + $0x1c8] sm:$0xff]
  %v140 = vld [vmem:[#allocation2 + $0x1d0] sm:$0xff]
  %v141 = vld [vmem:[#allocation2 + $0x1d8] sm:$0xff]
  %v142 = vld [vmem:[#allocation2 + $0x1e0] sm:$0xff]
  %v143 = vld [vmem:[#allocation2 + $0x1e8] sm:$0xff]
  %v144 = vld [vmem:[#allocation2 + $0x1f0] sm:$0xff]
  %v145 = vld [vmem:[#allocation2 + $0x1f8] sm:$0xff]
  %v146 = vld [vmem:[%s0] sm:$0xf]
  %v147 = vld [vmem:[%s0 + $0x4] sm:$0xf]
  %v148 = vld [vmem:[%s0 + $0x8] sm:$0xf]
  %v149 = vld [vmem:[%s0 + $0xc] sm:$0xf]
  %v150 = vld [vmem:[%s0 + $0x10] sm:$0xf]
  %v151 = vld [vmem:[%s0 + $0x14] sm:$0xf]
  %v152 = vld [vmem:[%s0 + $0x18] sm:$0xf]
  %v153 = vld [vmem:[%s0 + $0x1c] sm:$0xf]
  %v154 = vld [vmem:[%s0 + $0x20] sm:$0xf]
  %v155 = vld [vmem:[%s0 + $0x24] sm:$0xf]
  %v156 = vld [vmem:[%s0 + $0x28] sm:$0xf]
  %v157 = vld [vmem:[%s0 + $0x2c] sm:$0xf]
  %v158 = vld [vmem:[%s0 + $0x30] sm:$0xf]
  %v159 = vld [vmem:[%s0 + $0x34] sm:$0xf]
  %v160 = vld [vmem:[%s0 + $0x38] sm:$0xf]
  %v161 = vld [vmem:[%s0 + $0x3c] sm:$0xf]
  %v162 = vld [vmem:[%s0 + $0x40] sm:$0xf]
  %v163 = vld [vmem:[%s0 + $0x44] sm:$0xf]
  %v164 = vld [vmem:[%s0 + $0x48] sm:$0xf]
  %v165 = vld [vmem:[%s0 + $0x4c] sm:$0xf]
  %v166 = vld [vmem:[%s0 + $0x50] sm:$0xf]
  %v167 = vld [vmem:[%s0 + $0x54] sm:$0xf]
  %v168 = vld [vmem:[%s0 + $0x58] sm:$0xf]
  %v169 = vld [vmem:[%s0 + $0x5c] sm:$0xf]
  %v170 = vld [vmem:[%s0 + $0x60] sm:$0xf]
  %v171 = vld [vmem:[%s0 + $0x64] sm:$0xf]
  %v172 = vld [vmem:[%s0 + $0x68] sm:$0xf]
  %v173 = vld [vmem:[%s0 + $0x6c] sm:$0xf]
  %v174 = vld [vmem:[%s0 + $0x70] sm:$0xf]
  %v175 = vld [vmem:[%s0 + $0x74] sm:$0xf]
  %v176 = vld [vmem:[%s0 + $0x78] sm:$0xf]
  %v177 = vld [vmem:[%s0 + $0x7c] sm:$0xf]
  %v178 = vld [vmem:[%s0 + $0x80] sm:$0xf]
  %v179 = vld [vmem:[%s0 + $0x84] sm:$0xf]
  %v180 = vld [vmem:[%s0 + $0x88] sm:$0xf]
  %v181 = vld [vmem:[%s0 + $0x8c] sm:$0xf]
  %v182 = vld [vmem:[%s0 + $0x90] sm:$0xf]
  %v183 = vld [vmem:[%s0 + $0x94] sm:$0xf]
  %v184 = vld [vmem:[%s0 + $0x98] sm:$0xf]
  %v185 = vld [vmem:[%s0 + $0x9c] sm:$0xf]
  %v186 = vld [vmem:[%s0 + $0xa0] sm:$0xf]
  %v187 = vld [vmem:[%s0 + $0xa4] sm:$0xf]
  %v188 = vld [vmem:[%s0 + $0xa8] sm:$0xf]
  %v189 = vld [vmem:[%s0 + $0xac] sm:$0xf]
  %v190 = vld [vmem:[%s0 + $0xb0] sm:$0xf]
  %v191 = vld [vmem:[%s0 + $0xb4] sm:$0xf]
  %v192 = vld [vmem:[%s0 + $0xb8] sm:$0xf]
  %v193 = vld [vmem:[%s0 + $0xbc] sm:$0xf]
  %v194 = vld [vmem:[%s0 + $0xc0] sm:$0xf]
  %v195 = vld [vmem:[%s0 + $0xc4] sm:$0xf]
  %v196 = vld [vmem:[%s0 + $0xc8] sm:$0xf]
  %v197 = vld [vmem:[%s0 + $0xcc] sm:$0xf]
  %v198 = vld [vmem:[%s0 + $0xd0] sm:$0xf]
  %v199 = vld [vmem:[%s0 + $0xd4] sm:$0xf]
  %v200 = vld [vmem:[%s0 + $0xd8] sm:$0xf]
  %v201 = vld [vmem:[%s0 + $0xdc] sm:$0xf]
  %v202 = vld [vmem:[%s0 + $0xe0] sm:$0xf]
  %v203 = vld [vmem:[%s0 + $0xe4] sm:$0xf]
  %v204 = vld [vmem:[%s0 + $0xe8] sm:$0xf]
  %v205 = vld [vmem:[%s0 + $0xec] sm:$0xf]
  %v206 = vld [vmem:[%s0 + $0xf0] sm:$0xf]
  %v207 = vld [vmem:[%s0 + $0xf4] sm:$0xf]
  %v208 = vld [vmem:[%s0 + $0xf8] sm:$0xf]
  %v209 = vld [vmem:[%s0 + $0xfc] sm:$0xf]
  %v210 = vld [vmem:[%s1] sm:$0xf]
  %v211 = vld [vmem:[%s1 + $0x4] sm:$0xf]
  %v212 = vld [vmem:[%s1 + $0x8] sm:$0xf]
  %v213 = vld [vmem:[%s1 + $0xc] sm:$0xf]
  %v214 = vld [vmem:[%s1 + $0x10] sm:$0xf]
  %v215 = vld [vmem:[%s1 + $0x14] sm:$0xf]
  %v216 = vld [vmem:[%s1 + $0x18] sm:$0xf]
  %v217 = vld [vmem:[%s1 + $0x1c] sm:$0xf]
  %v218 = vld [vmem:[%s1 + $0x20] sm:$0xf]
  %v219 = vld [vmem:[%s1 + $0x24] sm:$0xf]
  %v220 = vld [vmem:[%s1 + $0x28] sm:$0xf]
  %v221 = vld [vmem:[%s1 + $0x2c] sm:$0xf]
  %v222 = vld [vmem:[%s1 + $0x30] sm:$0xf]
  %v223 = vld [vmem:[%s1 + $0x34] sm:$0xf]
  %v224 = vld [vmem:[%s1 + $0x38] sm:$0xf]
  %v225 = vld [vmem:[%s1 + $0x3c] sm:$0xf]
  %v290 = vunpack.c.l.b16 %v146
  %v291 = vunpack.c.l.b16 %v147
  %v292 = vunpack.c.l.b16 %v148
  %v293 = vunpack.c.l.b16 %v149
  %v294 = vunpack.c.l.b16 %v150
  %v295 = vunpack.c.l.b16 %v151
  %v296 = vunpack.c.l.b16 %v152
  %v297 = vunpack.c.l.b16 %v153
  %v298 = vunpack.c.l.b16 %v154
  %v299 = vunpack.c.l.b16 %v155
  %v300 = vunpack.c.l.b16 %v156
  %v301 = vunpack.c.l.b16 %v157
  %v302 = vunpack.c.l.b16 %v158
  %v303 = vunpack.c.l.b16 %v159
  %v304 = vunpack.c.l.b16 %v160
  %v305 = vunpack.c.l.b16 %v161
  %v306 = vunpack.c.l.b16 %v162
  %v307 = vunpack.c.l.b16 %v163
  %v308 = vunpack.c.l.b16 %v164
  %v309 = vunpack.c.l.b16 %v165
  %v310 = vunpack.c.l.b16 %v166
  %v311 = vunpack.c.l.b16 %v167
  %v312 = vunpack.c.l.b16 %v168
  %v313 = vunpack.c.l.b16 %v169
  %v314 = vunpack.c.l.b16 %v170
  %v315 = vunpack.c.l.b16 %v171
  %v316 = vunpack.c.l.b16 %v172
  %v317 = vunpack.c.l.b16 %v173
  %v318 = vunpack.c.l.b16 %v174
  %v319 = vunpack.c.l.b16 %v175
  %v320 = vunpack.c.l.b16 %v176
  %v321 = vunpack.c.l.b16 %v177
  %v322 = vunpack.c.l.b16 %v178
  %v323 = vunpack.c.l.b16 %v179
  %v324 = vunpack.c.l.b16 %v180
  %v325 = vunpack.c.l.b16 %v181
  %v326 = vunpack.c.l.b16 %v182
  %v327 = vunpack.c.l.b16 %v183
  %v328 = vunpack.c.l.b16 %v184
  %v329 = vunpack.c.l.b16 %v185
  %v330 = vunpack.c.l.b16 %v186
  %v331 = vunpack.c.l.b16 %v187
  %v332 = vunpack.c.l.b16 %v188
  %v333 = vunpack.c.l.b16 %v189
  %v334 = vunpack.c.l.b16 %v190
  %v335 = vunpack.c.l.b16 %v191
  %v336 = vunpack.c.l.b16 %v192
  %v337 = vunpack.c.l.b16 %v193
  %v338 = vunpack.c.l.b16 %v194
  %v339 = vunpack.c.l.b16 %v195
  %v340 = vunpack.c.l.b16 %v196
  %v341 = vunpack.c.l.b16 %v197
  %v342 = vunpack.c.l.b16 %v198
  %v343 = vunpack.c.l.b16 %v199
  %v344 = vunpack.c.l.b16 %v200
  %v345 = vunpack.c.l.b16 %v201
  %v346 = vunpack.c.l.b16 %v202
  %v347 = vunpack.c.l.b16 %v203
  %v348 = vunpack.c.l.b16 %v204
  %v349 = vunpack.c.l.b16 %v205
  %v350 = vunpack.c.l.b16 %v206
  %v351 = vunpack.c.l.b16 %v207
  %v352 = vunpack.c.l.b16 %v208
  %v353 = vunpack.c.l.b16 %v209
  %v354 = vpack.c.b16 %v291, %v290
  %v355 = vpack.c.b16 %v293, %v292
  %v356 = vpack.c.b16 %v295, %v294
  %v357 = vpack.c.b16 %v297, %v296
  %v358 = vpack.c.b16 %v299, %v298
  %v359 = vpack.c.b16 %v301, %v300
  %v360 = vpack.c.b16 %v303, %v302
  %v361 = vpack.c.b16 %v305, %v304
  %v362 = vpack.c.b16 %v307, %v306
  %v363 = vpack.c.b16 %v309, %v308
  %v364 = vpack.c.b16 %v311, %v310
  %v365 = vpack.c.b16 %v313, %v312
  %v366 = vpack.c.b16 %v315, %v314
  %v367 = vpack.c.b16 %v317, %v316
  %v368 = vpack.c.b16 %v319, %v318
  %v369 = vpack.c.b16 %v321, %v320
  %v370 = vpack.c.b16 %v323, %v322
  %v371 = vpack.c.b16 %v325, %v324
  %v372 = vpack.c.b16 %v327, %v326
  %v373 = vpack.c.b16 %v329, %v328
  %v374 = vpack.c.b16 %v331, %v330
  %v375 = vpack.c.b16 %v333, %v332
  %v376 = vpack.c.b16 %v335, %v334
  %v377 = vpack.c.b16 %v337, %v336
  %v378 = vpack.c.b16 %v339, %v338
  %v379 = vpack.c.b16 %v341, %v340
  %v380 = vpack.c.b16 %v343, %v342
  %v381 = vpack.c.b16 %v345, %v344
  %v382 = vpack.c.b16 %v347, %v346
  %v383 = vpack.c.b16 %v349, %v348
  %v384 = vpack.c.b16 %v351, %v350
  %v385 = vpack.c.b16 %v353, %v352
  %v434 = vunpack.c.l.b16 %v210
  %v435 = vunpack.c.l.b16 %v211
  %v436 = vunpack.c.l.b16 %v212
  %v437 = vunpack.c.l.b16 %v213
  %v438 = vunpack.c.l.b16 %v214
  %v439 = vunpack.c.l.b16 %v215
  %v440 = vunpack.c.l.b16 %v216
  %v441 = vunpack.c.l.b16 %v217
  %v442 = vunpack.c.l.b16 %v218
  %v443 = vunpack.c.l.b16 %v219
  %v444 = vunpack.c.l.b16 %v220
  %v445 = vunpack.c.l.b16 %v221
  %v446 = vunpack.c.l.b16 %v222
  %v447 = vunpack.c.l.b16 %v223
  %v448 = vunpack.c.l.b16 %v224
  %v449 = vunpack.c.l.b16 %v225
  %v450 = vpack.c.b16 %v435, %v434
  %v451 = vpack.c.b16 %v437, %v436
  %v452 = vpack.c.b16 %v439, %v438
  %v453 = vpack.c.b16 %v441, %v440
  %v454 = vpack.c.b16 %v443, %v442
  %v455 = vpack.c.b16 %v445, %v444
  %v456 = vpack.c.b16 %v447, %v446
  %v457 = vpack.c.b16 %v449, %v448
  %466 = vmatpush.bf16.msra.mxu0 %v457
  %467 = vmatpush.bf16.msra.mxu0 %v456
  %468 = vmatpush.bf16.msra.mxu0 %v455
  %469 = vmatpush.bf16.msra.mxu0 %v454
  %470 = vmatpush.bf16.msra.mxu0 %v453
  %471 = vmatpush.bf16.msra.mxu0 %v452
  %472 = vmatpush.bf16.msra.mxu0 %v451
  %473 = vmatpush.bf16.msra.mxu0 %v450
  %474 = vmatmul.bf16.gmra.mxu0 %v354
  %v475 = vpop.f32.mrf.mxu0
  %v476 = vadd.f32 0.0, %v475
  %v477 = vpop.f32.mrf.mxu0
  %v478 = vadd.f32 0.0, %v477
  %479 = vmatmul.bf16.gmra.mxu0 %v355
  %v480 = vpop.f32.mrf.mxu0
  %v481 = vadd.f32 0.0, %v480
  %v482 = vpop.f32.mrf.mxu0
  %v483 = vadd.f32 0.0, %v482
  %484 = vmatmul.bf16.gmra.mxu0 %v356
  %v485 = vpop.f32.mrf.mxu0
  %v486 = vadd.f32 0.0, %v485
  %v487 = vpop.f32.mrf.mxu0
  %v488 = vadd.f32 0.0, %v487
  %489 = vmatmul.bf16.gmra.mxu0 %v357
  %v490 = vpop.f32.mrf.mxu0
  %v491 = vadd.f32 0.0, %v490
  %v492 = vpop.f32.mrf.mxu0
  %v493 = vadd.f32 0.0, %v492
  %494 = vmatmul.bf16.gmra.mxu0 %v358
  %v495 = vpop.f32.mrf.mxu0
  %v496 = vadd.f32 0.0, %v495
  %v497 = vpop.f32.mrf.mxu0
  %v498 = vadd.f32 0.0, %v497
  %499 = vmatmul.bf16.gmra.mxu0 %v359
  %v500 = vpop.f32.mrf.mxu0
  %v501 = vadd.f32 0.0, %v500
  %v502 = vpop.f32.mrf.mxu0
  %v503 = vadd.f32 0.0, %v502
  %504 = vmatmul.bf16.gmra.mxu0 %v360
  %v505 = vpop.f32.mrf.mxu0
  %v506 = vadd.f32 0.0, %v505
  %v507 = vpop.f32.mrf.mxu0
  %v508 = vadd.f32 0.0, %v507
  %509 = vmatmul.bf16.gmra.mxu0 %v361
  %v510 = vpop.f32.mrf.mxu0
  %v511 = vadd.f32 0.0, %v510
  %v512 = vpop.f32.mrf.mxu0
  %v513 = vadd.f32 0.0, %v512
  %514 = vmatmul.bf16.gmra.mxu0 %v362
  %v515 = vpop.f32.mrf.mxu0
  %v516 = vadd.f32 0.0, %v515
  %v517 = vpop.f32.mrf.mxu0
  %v518 = vadd.f32 0.0, %v517
  %519 = vmatmul.bf16.gmra.mxu0 %v363
  %v520 = vpop.f32.mrf.mxu0
  %v521 = vadd.f32 0.0, %v520
  %v522 = vpop.f32.mrf.mxu0
  %v523 = vadd.f32 0.0, %v522
  %524 = vmatmul.bf16.gmra.mxu0 %v364
  %v525 = vpop.f32.mrf.mxu0
  %v526 = vadd.f32 0.0, %v525
  %v527 = vpop.f32.mrf.mxu0
  %v528 = vadd.f32 0.0, %v527
  %529 = vmatmul.bf16.gmra.mxu0 %v365
  %v530 = vpop.f32.mrf.mxu0
  %v531 = vadd.f32 0.0, %v530
  %v532 = vpop.f32.mrf.mxu0
  %v533 = vadd.f32 0.0, %v532
  %534 = vmatmul.bf16.gmra.mxu0 %v366
  %v535 = vpop.f32.mrf.mxu0
  %v536 = vadd.f32 0.0, %v535
  %v537 = vpop.f32.mrf.mxu0
  %v538 = vadd.f32 0.0, %v537
  %539 = vmatmul.bf16.gmra.mxu0 %v367
  %v540 = vpop.f32.mrf.mxu0
  %v541 = vadd.f32 0.0, %v540
  %v542 = vpop.f32.mrf.mxu0
  %v543 = vadd.f32 0.0, %v542
  %544 = vmatmul.bf16.gmra.mxu0 %v368
  %v545 = vpop.f32.mrf.mxu0
  %v546 = vadd.f32 0.0, %v545
  %v547 = vpop.f32.mrf.mxu0
  %v548 = vadd.f32 0.0, %v547
  %549 = vmatmul.bf16.gmra.mxu0 %v369
  %v550 = vpop.f32.mrf.mxu0
  %v551 = vadd.f32 0.0, %v550
  %v552 = vpop.f32.mrf.mxu0
  %v553 = vadd.f32 0.0, %v552
  %554 = vmatmul.bf16.gmra.mxu0 %v370
  %v555 = vpop.f32.mrf.mxu0
  %v556 = vadd.f32 0.0, %v555
  %v557 = vpop.f32.mrf.mxu0
  %v558 = vadd.f32 0.0, %v557
  %559 = vmatmul.bf16.gmra.mxu0 %v371
  %v560 = vpop.f32.mrf.mxu0
  %v561 = vadd.f32 0.0, %v560
  %v562 = vpop.f32.mrf.mxu0
  %v563 = vadd.f32 0.0, %v562
  %564 = vmatmul.bf16.gmra.mxu0 %v372
  %v565 = vpop.f32.mrf.mxu0
  %v566 = vadd.f32 0.0, %v565
  %v567 = vpop.f32.mrf.mxu0
  %v568 = vadd.f32 0.0, %v567
  %569 = vmatmul.bf16.gmra.mxu0 %v373
  %v570 = vpop.f32.mrf.mxu0
  %v571 = vadd.f32 0.0, %v570
  %v572 = vpop.f32.mrf.mxu0
  %v573 = vadd.f32 0.0, %v572
  %574 = vmatmul.bf16.gmra.mxu0 %v374
  %v575 = vpop.f32.mrf.mxu0
  %v576 = vadd.f32 0.0, %v575
  %v577 = vpop.f32.mrf.mxu0
  %v578 = vadd.f32 0.0, %v577
  %579 = vmatmul.bf16.gmra.mxu0 %v375
  %v580 = vpop.f32.mrf.mxu0
  %v581 = vadd.f32 0.0, %v580
  %v582 = vpop.f32.mrf.mxu0
  %v583 = vadd.f32 0.0, %v582
  %584 = vmatmul.bf16.gmra.mxu0 %v376
  %v585 = vpop.f32.mrf.mxu0
  %v586 = vadd.f32 0.0, %v585
  %v587 = vpop.f32.mrf.mxu0
  %v588 = vadd.f32 0.0, %v587
  %589 = vmatmul.bf16.gmra.mxu0 %v377
  %v590 = vpop.f32.mrf.mxu0
  %v591 = vadd.f32 0.0, %v590
  %v592 = vpop.f32.mrf.mxu0
  %v593 = vadd.f32 0.0, %v592
  %594 = vmatmul.bf16.gmra.mxu0 %v378
  %v595 = vpop.f32.mrf.mxu0
  %v596 = vadd.f32 0.0, %v595
  %v597 = vpop.f32.mrf.mxu0
  %v598 = vadd.f32 0.0, %v597
  %599 = vmatmul.bf16.gmra.mxu0 %v379
  %v600 = vpop.f32.mrf.mxu0
  %v601 = vadd.f32 0.0, %v600
  %v602 = vpop.f32.mrf.mxu0
  %v603 = vadd.f32 0.0, %v602
  %604 = vmatmul.bf16.gmra.mxu0 %v380
  %v605 = vpop.f32.mrf.mxu0
  %v606 = vadd.f32 0.0, %v605
  %v607 = vpop.f32.mrf.mxu0
  %v608 = vadd.f32 0.0, %v607
  %609 = vmatmul.bf16.gmra.mxu0 %v381
  %v610 = vpop.f32.mrf.mxu0
  %v611 = vadd.f32 0.0, %v610
  %v612 = vpop.f32.mrf.mxu0
  %v613 = vadd.f32 0.0, %v612
  %614 = vmatmul.bf16.gmra.mxu0 %v382
  %v615 = vpop.f32.mrf.mxu0
  %v616 = vadd.f32 0.0, %v615
  %v617 = vpop.f32.mrf.mxu0
  %v618 = vadd.f32 0.0, %v617
  %619 = vmatmul.bf16.gmra.mxu0 %v383
  %v620 = vpop.f32.mrf.mxu0
  %v621 = vadd.f32 0.0, %v620
  %v622 = vpop.f32.mrf.mxu0
  %v623 = vadd.f32 0.0, %v622
  %624 = vmatmul.bf16.gmra.mxu0 %v384
  %v625 = vpop.f32.mrf.mxu0
  %v626 = vadd.f32 0.0, %v625
  %v627 = vpop.f32.mrf.mxu0
  %v628 = vadd.f32 0.0, %v627
  %629 = vmatmul.bf16.gmra.mxu0 %v385
  %v630 = vpop.f32.mrf.mxu0
  %v631 = vadd.f32 0.0, %v630
  %v632 = vpop.f32.mrf.mxu0
  %v633 = vadd.f32 0.0, %v632
  %634 = vdwg.mxu0
  %v635 = vadd.f32 %v82, %v476
  %v636 = vadd.f32 %v83, %v478
  %v637 = vadd.f32 %v84, %v481
  %v638 = vadd.f32 %v85, %v483
  %v639 = vadd.f32 %v86, %v486
  %v640 = vadd.f32 %v87, %v488
  %v641 = vadd.f32 %v88, %v491
  %v642 = vadd.f32 %v89, %v493
  %v643 = vadd.f32 %v90, %v496
  %v644 = vadd.f32 %v91, %v498
  %v645 = vadd.f32 %v92, %v501
  %v646 = vadd.f32 %v93, %v503
  %v647 = vadd.f32 %v94, %v506
  %v648 = vadd.f32 %v95, %v508
  %v649 = vadd.f32 %v96, %v511
  %v650 = vadd.f32 %v97, %v513
  %v651 = vadd.f32 %v98, %v516
  %v652 = vadd.f32 %v99, %v518
  %v653 = vadd.f32 %v100, %v521
  %v654 = vadd.f32 %v101, %v523
  %v655 = vadd.f32 %v102, %v526
  %v656 = vadd.f32 %v103, %v528
  %v657 = vadd.f32 %v104, %v531
  %v658 = vadd.f32 %v105, %v533
  %v659 = vadd.f32 %v106, %v536
  %v660 = vadd.f32 %v107, %v538
  %v661 = vadd.f32 %v108, %v541
  %v662 = vadd.f32 %v109, %v543
  %v663 = vadd.f32 %v110, %v546
  %v664 = vadd.f32 %v111, %v548
  %v665 = vadd.f32 %v112, %v551
  %v666 = vadd.f32 %v113, %v553
  %v667 = vadd.f32 %v114, %v556
  %v668 = vadd.f32 %v115, %v558
  %v669 = vadd.f32 %v116, %v561
  %v670 = vadd.f32 %v117, %v563
  %v671 = vadd.f32 %v118, %v566
  %v672 = vadd.f32 %v119, %v568
  %v673 = vadd.f32 %v120, %v571
  %v674 = vadd.f32 %v121, %v573
  %v675 = vadd.f32 %v122, %v576
  %v676 = vadd.f32 %v123, %v578
  %v677 = vadd.f32 %v124, %v581
  %v678 = vadd.f32 %v125, %v583
  %v679 = vadd.f32 %v126, %v586
  %v680 = vadd.f32 %v127, %v588
  %v681 = vadd.f32 %v128, %v591
  %v682 = vadd.f32 %v129, %v593
  %v683 = vadd.f32 %v130, %v596
  %v684 = vadd.f32 %v131, %v598
  %v685 = vadd.f32 %v132, %v601
  %v686 = vadd.f32 %v133, %v603
  %v687 = vadd.f32 %v134, %v606
  %v688 = vadd.f32 %v135, %v608
  %v689 = vadd.f32 %v136, %v611
  %v690 = vadd.f32 %v137, %v613
  %v691 = vadd.f32 %v138, %v616
  %v692 = vadd.f32 %v139, %v618
  %v693 = vadd.f32 %v140, %v621
  %v694 = vadd.f32 %v141, %v623
  %v695 = vadd.f32 %v142, %v626
  %v696 = vadd.f32 %v143, %v628
  %v697 = vadd.f32 %v144, %v631
  %v698 = vadd.f32 %v145, %v633
  %699 = vst [vmem:[#allocation2] sm:$0xff] %v635
  %700 = vst [vmem:[#allocation2 + $0x8] sm:$0xff] %v636
  %701 = vst [vmem:[#allocation2 + $0x10] sm:$0xff] %v637
  %702 = vst [vmem:[#allocation2 + $0x18] sm:$0xff] %v638
  %703 = vst [vmem:[#allocation2 + $0x20] sm:$0xff] %v639
  %704 = vst [vmem:[#allocation2 + $0x28] sm:$0xff] %v640
  %705 = vst [vmem:[#allocation2 + $0x30] sm:$0xff] %v641
  %706 = vst [vmem:[#allocation2 + $0x38] sm:$0xff] %v642
  %707 = vst [vmem:[#allocation2 + $0x40] sm:$0xff] %v643
  %708 = vst [vmem:[#allocation2 + $0x48] sm:$0xff] %v644
  %709 = vst [vmem:[#allocation2 + $0x50] sm:$0xff] %v645
  %710 = vst [vmem:[#allocation2 + $0x58] sm:$0xff] %v646
  %711 = vst [vmem:[#allocation2 + $0x60] sm:$0xff] %v647
  %712 = vst [vmem:[#allocation2 + $0x68] sm:$0xff] %v648
  %713 = vst [vmem:[#allocation2 + $0x70] sm:$0xff] %v649
  %714 = vst [vmem:[#allocation2 + $0x78] sm:$0xff] %v650
  %715 = vst [vmem:[#allocation2 + $0x80] sm:$0xff] %v651
  %716 = vst [vmem:[#allocation2 + $0x88] sm:$0xff] %v652
  %717 = vst [vmem:[#allocation2 + $0x90] sm:$0xff] %v653
  %718 = vst [vmem:[#allocation2 + $0x98] sm:$0xff] %v654
  %719 = vst [vmem:[#allocation2 + $0xa0] sm:$0xff] %v655
  %720 = vst [vmem:[#allocation2 + $0xa8] sm:$0xff] %v656
  %721 = vst [vmem:[#allocation2 + $0xb0] sm:$0xff] %v657
  %722 = vst [vmem:[#allocation2 + $0xb8] sm:$0xff] %v658
  %723 = vst [vmem:[#allocation2 + $0xc0] sm:$0xff] %v659
  %724 = vst [vmem:[#allocation2 + $0xc8] sm:$0xff] %v660
  %725 = vst [vmem:[#allocation2 + $0xd0] sm:$0xff] %v661
  %726 = vst [vmem:[#allocation2 + $0xd8] sm:$0xff] %v662
  %727 = vst [vmem:[#allocation2 + $0xe0] sm:$0xff] %v663
  %728 = vst [vmem:[#allocation2 + $0xe8] sm:$0xff] %v664
  %729 = vst [vmem:[#allocation2 + $0xf0] sm:$0xff] %v665
  %730 = vst [vmem:[#allocation2 + $0xf8] sm:$0xff] %v666
  %731 = vst [vmem:[#allocation2 + $0x100] sm:$0xff] %v667
  %732 = vst [vmem:[#allocation2 + $0x108] sm:$0xff] %v668
  %733 = vst [vmem:[#allocation2 + $0x110] sm:$0xff] %v669
  %734 = vst [vmem:[#allocation2 + $0x118] sm:$0xff] %v670
  %735 = vst [vmem:[#allocation2 + $0x120] sm:$0xff] %v671
  %736 = vst [vmem:[#allocation2 + $0x128] sm:$0xff] %v672
  %737 = vst [vmem:[#allocation2 + $0x130] sm:$0xff] %v673
  %738 = vst [vmem:[#allocation2 + $0x138] sm:$0xff] %v674
  %739 = vst [vmem:[#allocation2 + $0x140] sm:$0xff] %v675
  %740 = vst [vmem:[#allocation2 + $0x148] sm:$0xff] %v676
  %741 = vst [vmem:[#allocation2 + $0x150] sm:$0xff] %v677
  %742 = vst [vmem:[#allocation2 + $0x158] sm:$0xff] %v678
  %743 = vst [vmem:[#allocation2 + $0x160] sm:$0xff] %v679
  %744 = vst [vmem:[#allocation2 + $0x168] sm:$0xff] %v680
  %745 = vst [vmem:[#allocation2 + $0x170] sm:$0xff] %v681
  %746 = vst [vmem:[#allocation2 + $0x178] sm:$0xff] %v682
  %747 = vst [vmem:[#allocation2 + $0x180] sm:$0xff] %v683
  %748 = vst [vmem:[#allocation2 + $0x188] sm:$0xff] %v684
  %749 = vst [vmem:[#allocation2 + $0x190] sm:$0xff] %v685
  %750 = vst [vmem:[#allocation2 + $0x198] sm:$0xff] %v686
  %751 = vst [vmem:[#allocation2 + $0x1a0] sm:$0xff] %v687
  %752 = vst [vmem:[#allocation2 + $0x1a8] sm:$0xff] %v688
  %753 = vst [vmem:[#allocation2 + $0x1b0] sm:$0xff] %v689
  %754 = vst [vmem:[#allocation2 + $0x1b8] sm:$0xff] %v690
  %755 = vst [vmem:[#allocation2 + $0x1c0] sm:$0xff] %v691
  %756 = vst [vmem:[#allocation2 + $0x1c8] sm:$0xff] %v692
  %757 = vst [vmem:[#allocation2 + $0x1d0] sm:$0xff] %v693
  %758 = vst [vmem:[#allocation2 + $0x1d8] sm:$0xff] %v694
  %759 = vst [vmem:[#allocation2 + $0x1e0] sm:$0xff] %v695
  %760 = vst [vmem:[#allocation2 + $0x1e8] sm:$0xff] %v696
  %761 = vst [vmem:[#allocation2 + $0x1f0] sm:$0xff] %v697
  %762 = vst [vmem:[#allocation2 + $0x1f8] sm:$0xff] %v698
  // Predicated region
  $region18: #{fecnet_forward.3} parent=0 // pred_check
    %p763 = pneg %p14
  $region19: #{fecnet_forward.3} parent=0 // pred_check_branch
    %765 = sbr.rel (%p763) target = $region21
  $region20: #{fecnet_forward.3} parent=0 // pred_region
    %v766 = vld [vmem:[#allocation2] sm:$0xff]
    %v767 = vld [vmem:[#allocation2 + $0x8] sm:$0xff]
    %v768 = vld [vmem:[#allocation2 + $0x10] sm:$0xff]
    %v769 = vld [vmem:[#allocation2 + $0x18] sm:$0xff]
    %v770 = vld [vmem:[#allocation2 + $0x20] sm:$0xff]
    %v771 = vld [vmem:[#allocation2 + $0x28] sm:$0xff]
    %v772 = vld [vmem:[#allocation2 + $0x30] sm:$0xff]
    %v773 = vld [vmem:[#allocation2 + $0x38] sm:$0xff]
    %v774 = vld [vmem:[#allocation2 + $0x40] sm:$0xff]
    %v775 = vld [vmem:[#allocation2 + $0x48] sm:$0xff]
    %v776 = vld [vmem:[#allocation2 + $0x50] sm:$0xff]
    %v777 = vld [vmem:[#allocation2 + $0x58] sm:$0xff]
    %v778 = vld [vmem:[#allocation2 + $0x60] sm:$0xff]
    %v779 = vld [vmem:[#allocation2 + $0x68] sm:$0xff]
    %v780 = vld [vmem:[#allocation2 + $0x70] sm:$0xff]
    %v781 = vld [vmem:[#allocation2 + $0x78] sm:$0xff]
    %v782 = vld [vmem:[#allocation2 + $0x80] sm:$0xff]
    %v783 = vld [vmem:[#allocation2 + $0x88] sm:$0xff]
    %v784 = vld [vmem:[#allocation2 + $0x90] sm:$0xff]
    %v785 = vld [vmem:[#allocation2 + $0x98] sm:$0xff]
    %v786 = vld [vmem:[#allocation2 + $0xa0] sm:$0xff]
    %v787 = vld [vmem:[#allocation2 + $0xa8] sm:$0xff]
    %v788 = vld [vmem:[#allocation2 + $0xb0] sm:$0xff]
    %v789 = vld [vmem:[#allocation2 + $0xb8] sm:$0xff]
    %v790 = vld [vmem:[#allocation2 + $0xc0] sm:$0xff]
    %v791 = vld [vmem:[#allocation2 + $0xc8] sm:$0xff]
    %v792 = vld [vmem:[#allocation2 + $0xd0] sm:$0xff]
    %v793 = vld [vmem:[#allocation2 + $0xd8] sm:$0xff]
    %v794 = vld [vmem:[#allocation2 + $0xe0] sm:$0xff]
    %v795 = vld [vmem:[#allocation2 + $0xe8] sm:$0xff]
    %v796 = vld [vmem:[#allocation2 + $0xf0] sm:$0xff]
    %v797 = vld [vmem:[#allocation2 + $0xf8] sm:$0xff]
    %v798 = vld [vmem:[#allocation2 + $0x100] sm:$0xff]
    %v799 = vld [vmem:[#allocation2 + $0x108] sm:$0xff]
    %v800 = vld [vmem:[#allocation2 + $0x110] sm:$0xff]
    %v801 = vld [vmem:[#allocation2 + $0x118] sm:$0xff]
    %v802 = vld [vmem:[#allocation2 + $0x120] sm:$0xff]
    %v803 = vld [vmem:[#allocation2 + $0x128] sm:$0xff]
    %v804 = vld [vmem:[#allocation2 + $0x130] sm:$0xff]
    %v805 = vld [vmem:[#allocation2 + $0x138] sm:$0xff]
    %v806 = vld [vmem:[#allocation2 + $0x140] sm:$0xff]
    %v807 = vld [vmem:[#allocation2 + $0x148] sm:$0xff]
    %v808 = vld [vmem:[#allocation2 + $0x150] sm:$0xff]
    %v809 = vld [vmem:[#allocation2 + $0x158] sm:$0xff]
    %v810 = vld [vmem:[#allocation2 + $0x160] sm:$0xff]
    %v811 = vld [vmem:[#allocation2 + $0x168] sm:$0xff]
    %v812 = vld [vmem:[#allocation2 + $0x170] sm:$0xff]
    %v813 = vld [vmem:[#allocation2 + $0x178] sm:$0xff]
    %v814 = vld [vmem:[#allocation2 + $0x180] sm:$0xff]
    %v815 = vld [vmem:[#allocation2 + $0x188] sm:$0xff]
    %v816 = vld [vmem:[#allocation2 + $0x190] sm:$0xff]
    %v817 = vld [vmem:[#allocation2 + $0x198] sm:$0xff]
    %v818 = vld [vmem:[#allocation2 + $0x1a0] sm:$0xff]
    %v819 = vld [vmem:[#allocation2 + $0x1a8] sm:$0xff]
    %v820 = vld [vmem:[#allocation2 + $0x1b0] sm:$0xff]
    %v821 = vld [vmem:[#allocation2 + $0x1b8] sm:$0xff]
    %v822 = vld [vmem:[#allocation2 + $0x1c0] sm:$0xff]
    %v823 = vld [vmem:[#allocation2 + $0x1c8] sm:$0xff]
    %v824 = vld [vmem:[#allocation2 + $0x1d0] sm:$0xff]
    %v825 = vld [vmem:[#allocation2 + $0x1d8] sm:$0xff]
    %v826 = vld [vmem:[#allocation2 + $0x1e0] sm:$0xff]
    %v827 = vld [vmem:[#allocation2 + $0x1e8] sm:$0xff]
    %v828 = vld [vmem:[#allocation2 + $0x1f0] sm:$0xff]
    %v829 = vld [vmem:[#allocation2 + $0x1f8] sm:$0xff]
    %v830 = vld [vmem:[%s2] sm:$0x1]
    %v832 = vperm.slane %v830, 0
    %v834 = vadd.f32 %v766, %v832
    %v835 = vadd.f32 %v767, %v832
    %v836 = vadd.f32 %v768, %v832
    %v837 = vadd.f32 %v769, %v832
    %v838 = vadd.f32 %v770, %v832
    %v839 = vadd.f32 %v771, %v832
    %v840 = vadd.f32 %v772, %v832
    %v841 = vadd.f32 %v773, %v832
    %v842 = vadd.f32 %v774, %v832
    %v843 = vadd.f32 %v775, %v832
    %v844 = vadd.f32 %v776, %v832
    %v845 = vadd.f32 %v777, %v832
    %v846 = vadd.f32 %v778, %v832
    %v847 = vadd.f32 %v779, %v832
    %v848 = vadd.f32 %v780, %v832
    %v849 = vadd.f32 %v781, %v832
    %v850 = vadd.f32 %v782, %v832
    %v851 = vadd.f32 %v783, %v832
    %v852 = vadd.f32 %v784, %v832
    %v853 = vadd.f32 %v785, %v832
    %v854 = vadd.f32 %v786, %v832
    %v855 = vadd.f32 %v787, %v832
    %v856 = vadd.f32 %v788, %v832
    %v857 = vadd.f32 %v789, %v832
    %v858 = vadd.f32 %v790, %v832
    %v859 = vadd.f32 %v791, %v832
    %v860 = vadd.f32 %v792, %v832
    %v861 = vadd.f32 %v793, %v832
    %v862 = vadd.f32 %v794, %v832
    %v863 = vadd.f32 %v795, %v832
    %v864 = vadd.f32 %v796, %v832
    %v865 = vadd.f32 %v797, %v832
    %v866 = vadd.f32 %v798, %v832
    %v867 = vadd.f32 %v799, %v832
    %v868 = vadd.f32 %v800, %v832
    %v869 = vadd.f32 %v801, %v832
    %v870 = vadd.f32 %v802, %v832
    %v871 = vadd.f32 %v803, %v832
    %v872 = vadd.f32 %v804, %v832
    %v873 = vadd.f32 %v805, %v832
    %v874 = vadd.f32 %v806, %v832
    %v875 = vadd.f32 %v807, %v832
    %v876 = vadd.f32 %v808, %v832
    %v877 = vadd.f32 %v809, %v832
    %v878 = vadd.f32 %v810, %v832
    %v879 = vadd.f32 %v811, %v832
    %v880 = vadd.f32 %v812, %v832
    %v881 = vadd.f32 %v813, %v832
    %v882 = vadd.f32 %v814, %v832
    %v883 = vadd.f32 %v815, %v832
    %v884 = vadd.f32 %v816, %v832
    %v885 = vadd.f32 %v817, %v832
    %v886 = vadd.f32 %v818, %v832
    %v887 = vadd.f32 %v819, %v832
    %v888 = vadd.f32 %v820, %v832
    %v889 = vadd.f32 %v821, %v832
    %v890 = vadd.f32 %v822, %v832
    %v891 = vadd.f32 %v823, %v832
    %v892 = vadd.f32 %v824, %v832
    %v893 = vadd.f32 %v825, %v832
    %v894 = vadd.f32 %v826, %v832
    %v895 = vadd.f32 %v827, %v832
    %v896 = vadd.f32 %v828, %v832
    %v897 = vadd.f32 %v829, %v832
    %v898 = vmax.f32 %v834, 0.0
    %v899 = vmax.f32 %v835, 0.0
    %v900 = vmax.f32 %v836, 0.0
    %v901 = vmax.f32 %v837, 0.0
    %v902 = vmax.f32 %v838, 0.0
    %v903 = vmax.f32 %v839, 0.0
    %v904 = vmax.f32 %v840, 0.0
    %v905 = vmax.f32 %v841, 0.0
    %v906 = vmax.f32 %v842, 0.0
    %v907 = vmax.f32 %v843, 0.0
    %v908 = vmax.f32 %v844, 0.0
    %v909 = vmax.f32 %v845, 0.0
    %v910 = vmax.f32 %v846, 0.0
    %v911 = vmax.f32 %v847, 0.0
    %v912 = vmax.f32 %v848, 0.0
    %v913 = vmax.f32 %v849, 0.0
    %v914 = vmax.f32 %v850, 0.0
    %v915 = vmax.f32 %v851, 0.0
    %v916 = vmax.f32 %v852, 0.0
    %v917 = vmax.f32 %v853, 0.0
    %v918 = vmax.f32 %v854, 0.0
    %v919 = vmax.f32 %v855, 0.0
    %v920 = vmax.f32 %v856, 0.0
    %v921 = vmax.f32 %v857, 0.0
    %v922 = vmax.f32 %v858, 0.0
    %v923 = vmax.f32 %v859, 0.0
    %v924 = vmax.f32 %v860, 0.0
    %v925 = vmax.f32 %v861, 0.0
    %v926 = vmax.f32 %v862, 0.0
    %v927 = vmax.f32 %v863, 0.0
    %v928 = vmax.f32 %v864, 0.0
    %v929 = vmax.f32 %v865, 0.0
    %v930 = vmax.f32 %v866, 0.0
    %v931 = vmax.f32 %v867, 0.0
    %v932 = vmax.f32 %v868, 0.0
    %v933 = vmax.f32 %v869, 0.0
    %v934 = vmax.f32 %v870, 0.0
    %v935 = vmax.f32 %v871, 0.0
    %v936 = vmax.f32 %v872, 0.0
    %v937 = vmax.f32 %v873, 0.0
    %v938 = vmax.f32 %v874, 0.0
    %v939 = vmax.f32 %v875, 0.0
    %v940 = vmax.f32 %v876, 0.0
    %v941 = vmax.f32 %v877, 0.0
    %v942 = vmax.f32 %v878, 0.0
    %v943 = vmax.f32 %v879, 0.0
    %v944 = vmax.f32 %v880, 0.0
    %v945 = vmax.f32 %v881, 0.0
    %v946 = vmax.f32 %v882, 0.0
    %v947 = vmax.f32 %v883, 0.0
    %v948 = vmax.f32 %v884, 0.0
    %v949 = vmax.f32 %v885, 0.0
    %v950 = vmax.f32 %v886, 0.0
    %v951 = vmax.f32 %v887, 0.0
    %v952 = vmax.f32 %v888, 0.0
    %v953 = vmax.f32 %v889, 0.0
    %v954 = vmax.f32 %v890, 0.0
    %v955 = vmax.f32 %v891, 0.0
    %v956 = vmax.f32 %v892, 0.0
    %v957 = vmax.f32 %v893, 0.0
    %v958 = vmax.f32 %v894, 0.0
    %v959 = vmax.f32 %v895, 0.0
    %v960 = vmax.f32 %v896, 0.0
    %v961 = vmax.f32 %v897, 0.0
    %v962 = vpack.c.bf16 %v898, %v898
    %v963 = vpack.c.bf16 %v899, %v899
    %v964 = vpack.c.bf16 %v900, %v900
    %v965 = vpack.c.bf16 %v901, %v901
    %v966 = vpack.c.bf16 %v902, %v902
    %v967 = vpack.c.bf16 %v903, %v903
    %v968 = vpack.c.bf16 %v904, %v904
    %v969 = vpack.c.bf16 %v905, %v905
    %v970 = vpack.c.bf16 %v906, %v906
    %v971 = vpack.c.bf16 %v907, %v907
    %v972 = vpack.c.bf16 %v908, %v908
    %v973 = vpack.c.bf16 %v909, %v909
    %v974 = vpack.c.bf16 %v910, %v910
    %v975 = vpack.c.bf16 %v911, %v911
    %v976 = vpack.c.bf16 %v912, %v912
    %v977 = vpack.c.bf16 %v913, %v913
    %v978 = vpack.c.bf16 %v914, %v914
    %v979 = vpack.c.bf16 %v915, %v915
    %v980 = vpack.c.bf16 %v916, %v916
    %v981 = vpack.c.bf16 %v917, %v917
    %v982 = vpack.c.bf16 %v918, %v918
    %v983 = vpack.c.bf16 %v919, %v919
    %v984 = vpack.c.bf16 %v920, %v920
    %v985 = vpack.c.bf16 %v921, %v921
    %v986 = vpack.c.bf16 %v922, %v922
    %v987 = vpack.c.bf16 %v923, %v923
    %v988 = vpack.c.bf16 %v924, %v924
    %v989 = vpack.c.bf16 %v925, %v925
    %v990 = vpack.c.bf16 %v926, %v926
    %v991 = vpack.c.bf16 %v927, %v927
    %v992 = vpack.c.bf16 %v928, %v928
    %v993 = vpack.c.bf16 %v929, %v929
    %v994 = vpack.c.bf16 %v930, %v930
    %v995 = vpack.c.bf16 %v931, %v931
    %v996 = vpack.c.bf16 %v932, %v932
    %v997 = vpack.c.bf16 %v933, %v933
    %v998 = vpack.c.bf16 %v934, %v934
    %v999 = vpack.c.bf16 %v935, %v935
    %v1000 = vpack.c.bf16 %v936, %v936
    %v1001 = vpack.c.bf16 %v937, %v937
    %v1002 = vpack.c.bf16 %v938, %v938
    %v1003 = vpack.c.bf16 %v939, %v939
    %v1004 = vpack.c.bf16 %v940, %v940
    %v1005 = vpack.c.bf16 %v941, %v941
    %v1006 = vpack.c.bf16 %v942, %v942
    %v1007 = vpack.c.bf16 %v943, %v943
    %v1008 = vpack.c.bf16 %v944, %v944
    %v1009 = vpack.c.bf16 %v945, %v945
    %v1010 = vpack.c.bf16 %v946, %v946
    %v1011 = vpack.c.bf16 %v947, %v947
    %v1012 = vpack.c.bf16 %v948, %v948
    %v1013 = vpack.c.bf16 %v949, %v949
    %v1014 = vpack.c.bf16 %v950, %v950
    %v1015 = vpack.c.bf16 %v951, %v951
    %v1016 = vpack.c.bf16 %v952, %v952
    %v1017 = vpack.c.bf16 %v953, %v953
    %v1018 = vpack.c.bf16 %v954, %v954
    %v1019 = vpack.c.bf16 %v955, %v955
    %v1020 = vpack.c.bf16 %v956, %v956
    %v1021 = vpack.c.bf16 %v957, %v957
    %v1022 = vpack.c.bf16 %v958, %v958
    %v1023 = vpack.c.bf16 %v959, %v959
    %v1024 = vpack.c.bf16 %v960, %v960
    %v1025 = vpack.c.bf16 %v961, %v961
    %1026 = vst [vmem:[%s3] sm:$0xf] %v962
    %1027 = vst [vmem:[%s3 + $0x4] sm:$0xf] %v963
    %1028 = vst [vmem:[%s3 + $0x8] sm:$0xf] %v964
    %1029 = vst [vmem:[%s3 + $0xc] sm:$0xf] %v965
    %1030 = vst [vmem:[%s3 + $0x10] sm:$0xf] %v966
    %1031 = vst [vmem:[%s3 + $0x14] sm:$0xf] %v967
    %1032 = vst [vmem:[%s3 + $0x18] sm:$0xf] %v968
    %1033 = vst [vmem:[%s3 + $0x1c] sm:$0xf] %v969
    %1034 = vst [vmem:[%s3 + $0x20] sm:$0xf] %v970
    %1035 = vst [vmem:[%s3 + $0x24] sm:$0xf] %v971
    %1036 = vst [vmem:[%s3 + $0x28] sm:$0xf] %v972
    %1037 = vst [vmem:[%s3 + $0x2c] sm:$0xf] %v973
    %1038 = vst [vmem:[%s3 + $0x30] sm:$0xf] %v974
    %1039 = vst [vmem:[%s3 + $0x34] sm:$0xf] %v975
    %1040 = vst [vmem:[%s3 + $0x38] sm:$0xf] %v976
    %1041 = vst [vmem:[%s3 + $0x3c] sm:$0xf] %v977
    %1042 = vst [vmem:[%s3 + $0x40] sm:$0xf] %v978
    %1043 = vst [vmem:[%s3 + $0x44] sm:$0xf] %v979
    %1044 = vst [vmem:[%s3 + $0x48] sm:$0xf] %v980
    %1045 = vst [vmem:[%s3 + $0x4c] sm:$0xf] %v981
    %1046 = vst [vmem:[%s3 + $0x50] sm:$0xf] %v982
    %1047 = vst [vmem:[%s3 + $0x54] sm:$0xf] %v983
    %1048 = vst [vmem:[%s3 + $0x58] sm:$0xf] %v984
    %1049 = vst [vmem:[%s3 + $0x5c] sm:$0xf] %v985
    %1050 = vst [vmem:[%s3 + $0x60] sm:$0xf] %v986
    %1051 = vst [vmem:[%s3 + $0x64] sm:$0xf] %v987
    %1052 = vst [vmem:[%s3 + $0x68] sm:$0xf] %v988
    %1053 = vst [vmem:[%s3 + $0x6c] sm:$0xf] %v989
    %1054 = vst [vmem:[%s3 + $0x70] sm:$0xf] %v990
    %1055 = vst [vmem:[%s3 + $0x74] sm:$0xf] %v991
    %1056 = vst [vmem:[%s3 + $0x78] sm:$0xf] %v992
    %1057 = vst [vmem:[%s3 + $0x7c] sm:$0xf] %v993
    %1058 = vst [vmem:[%s3 + $0x80] sm:$0xf] %v994
    %1059 = vst [vmem:[%s3 + $0x84] sm:$0xf] %v995
    %1060 = vst [vmem:[%s3 + $0x88] sm:$0xf] %v996
    %1061 = vst [vmem:[%s3 + $0x8c] sm:$0xf] %v997
    %1062 = vst [vmem:[%s3 + $0x90] sm:$0xf] %v998
    %1063 = vst [vmem:[%s3 + $0x94] sm:$0xf] %v999
    %1064 = vst [vmem:[%s3 + $0x98] sm:$0xf] %v1000
    %1065 = vst [vmem:[%s3 + $0x9c] sm:$0xf] %v1001
    %1066 = vst [vmem:[%s3 + $0xa0] sm:$0xf] %v1002
    %1067 = vst [vmem:[%s3 + $0xa4] sm:$0xf] %v1003
    %1068 = vst [vmem:[%s3 + $0xa8] sm:$0xf] %v1004
    %1069 = vst [vmem:[%s3 + $0xac] sm:$0xf] %v1005
    %1070 = vst [vmem:[%s3 + $0xb0] sm:$0xf] %v1006
    %1071 = vst [vmem:[%s3 + $0xb4] sm:$0xf] %v1007
    %1072 = vst [vmem:[%s3 + $0xb8] sm:$0xf] %v1008
    %1073 = vst [vmem:[%s3 + $0xbc] sm:$0xf] %v1009
    %1074 = vst [vmem:[%s3 + $0xc0] sm:$0xf] %v1010
    %1075 = vst [vmem:[%s3 + $0xc4] sm:$0xf] %v1011
    %1076 = vst [vmem:[%s3 + $0xc8] sm:$0xf] %v1012
    %1077 = vst [vmem:[%s3 + $0xcc] sm:$0xf] %v1013
    %1078 = vst [vmem:[%s3 + $0xd0] sm:$0xf] %v1014
    %1079 = vst [vmem:[%s3 + $0xd4] sm:$0xf] %v1015
    %1080 = vst [vmem:[%s3 + $0xd8] sm:$0xf] %v1016
    %1081 = vst [vmem:[%s3 + $0xdc] sm:$0xf] %v1017
    %1082 = vst [vmem:[%s3 + $0xe0] sm:$0xf] %v1018
    %1083 = vst [vmem:[%s3 + $0xe4] sm:$0xf] %v1019
    %1084 = vst [vmem:[%s3 + $0xe8] sm:$0xf] %v1020
    %1085 = vst [vmem:[%s3 + $0xec] sm:$0xf] %v1021
    %1086 = vst [vmem:[%s3 + $0xf0] sm:$0xf] %v1022
    %1087 = vst [vmem:[%s3 + $0xf4] sm:$0xf] %v1023
    %1088 = vst [vmem:[%s3 + $0xf8] sm:$0xf] %v1024
    %1089 = vst [vmem:[%s3 + $0xfc] sm:$0xf] %v1025
  $region21: #{fecnet_forward.3} parent=0 // pred_fallthru
    _
  // Predicated region
  $region22: #{fecnet_forward.3} parent=0 // pred_check
    _
  $region23: #{fecnet_forward.3} parent=0 // pred_check_branch
    %1091 = sbr.rel (0) target = $region25
  $region24: #{fecnet_forward.3} parent=0 // pred_region
    _
  $region25: #{fecnet_forward.3} parent=0 // pred_fallthru
    _
  // Predicated region
  $region26: #{fecnet_forward.3} parent=0 // pred_check
    _
  $region27: #{fecnet_forward.3} parent=0 // pred_check_branch
    %1093 = sbr.rel (0) target = $region29
  $region28: #{fecnet_forward.3} parent=0 // pred_region
    _
  $region29: #{fecnet_forward.3} parent=0 // pred_fallthru
    _

// kernel: fecnet_forward.4
$region0: #{fecnet_forward.4}
  #allocation0 [shape = 'u32[]', space=smem, size = 0x4, offset = 0x4, fixed_abs, tag = 'smem constant byte address 0x4 - core index']
  #allocation1 [shape = 'u32[72,128]{1,0:T(1,128)}', space=vmem, size = 0x9000, scoped, tag = 'internal scratch']
  #allocation2 [shape = 'f32[128,128]{1,0:T(8,128)}', space=vmem, size = 0x10000, scoped, tag = 'scratch operand']
  %s0 = inlined_call_operand.vmem [shape: bf16[128,384], index: 0, kind: input, shape index: {}]
  %s1 = inlined_call_operand.vmem [shape: bf16[384,128], index: 1, kind: input, shape index: {}]
  %s2 = inlined_call_operand.vmem [shape: f32[1,128], index: 2, kind: input, shape index: {}]
  %s3 = inlined_call_operand.vmem [shape: bf16[128,128], index: 3, kind: output, shape index: {}]
  %s4 = sld [smem:[#allocation0]]
  $region30: #{fecnet_forward.4} parent=0
    _
  %s6 = ssub.s32 1, %s4
  %s7 = scalar_select 0, %s6, %s4
  // Predicated region
  $region2: #{fecnet_forward.4} parent=0 // pred_check
    _
  $region3: #{fecnet_forward.4} parent=0 // pred_check_branch
    %9 = sbr.rel (0) target = $region5
  $region4: #{fecnet_forward.4} parent=0 // pred_region
    _
  $region5: #{fecnet_forward.4} parent=0 // pred_fallthru
    _
  // Predicated region
  $region6: #{fecnet_forward.4} parent=0 // pred_check
    _
  $region7: #{fecnet_forward.4} parent=0 // pred_check_branch
    %11 = sbr.rel (0) target = $region9
  $region8: #{fecnet_forward.4} parent=0 // pred_region
    _
  $region9: #{fecnet_forward.4} parent=0 // pred_fallthru
    _
  // Predicated region
  $region10: #{fecnet_forward.4} parent=0 // pred_check
    _
  $region11: #{fecnet_forward.4} parent=0 // pred_check_branch
    %13 = sbr.rel (0) target = $region13
  $region12: #{fecnet_forward.4} parent=0 // pred_region
    _
  $region13: #{fecnet_forward.4} parent=0 // pred_fallthru
    _
  %p14 = scmp.eq.s32.totalorder 0, 0
  // Predicated region
  $region14: #{fecnet_forward.4} parent=0 // pred_check
    %p15 = pneg %p14
  $region15: #{fecnet_forward.4} parent=0 // pred_check_branch
    %17 = sbr.rel (%p15) target = $region17
  $region16: #{fecnet_forward.4} parent=0 // pred_region
    %18 = vst [vmem:[#allocation2] sm:$0xff] 0.0
    %19 = vst [vmem:[#allocation2 + $0x8] sm:$0xff] 0.0
    %20 = vst [vmem:[#allocation2 + $0x10] sm:$0xff] 0.0
    %21 = vst [vmem:[#allocation2 + $0x18] sm:$0xff] 0.0
    %22 = vst [vmem:[#allocation2 + $0x20] sm:$0xff] 0.0
    %23 = vst [vmem:[#allocation2 + $0x28] sm:$0xff] 0.0
    %24 = vst [vmem:[#allocation2 + $0x30] sm:$0xff] 0.0
    %25 = vst [vmem:[#allocation2 + $0x38] sm:$0xff] 0.0
    %26 = vst [vmem:[#allocation2 + $0x40] sm:$0xff] 0.0
    %27 = vst [vmem:[#allocation2 + $0x48] sm:$0xff] 0.0
    %28 = vst [vmem:[#allocation2 + $0x50] sm:$0xff] 0.0
    %29 = vst [vmem:[#allocation2 + $0x58] sm:$0xff] 0.0
    %30 = vst [vmem:[#allocation2 + $0x60] sm:$0xff] 0.0
    %31 = vst [vmem:[#allocation2 + $0x68] sm:$0xff] 0.0
    %32 = vst [vmem:[#allocation2 + $0x70] sm:$0xff] 0.0
    %33 = vst [vmem:[#allocation2 + $0x78] sm:$0xff] 0.0
  $region17: #{fecnet_forward.4} parent=0 // pred_fallthru
    _
  %v34 = vld [vmem:[#allocation2] sm:$0xff]
  %v35 = vld [vmem:[#allocation2 + $0x8] sm:$0xff]
  %v36 = vld [vmem:[#allocation2 + $0x10] sm:$0xff]
  %v37 = vld [vmem:[#allocation2 + $0x18] sm:$0xff]
  %v38 = vld [vmem:[#allocation2 + $0x20] sm:$0xff]
  %v39 = vld [vmem:[#allocation2 + $0x28] sm:$0xff]
  %v40 = vld [vmem:[#allocation2 + $0x30] sm:$0xff]
  %v41 = vld [vmem:[#allocation2 + $0x38] sm:$0xff]
  %v42 = vld [vmem:[#allocation2 + $0x40] sm:$0xff]
  %v43 = vld [vmem:[#allocation2 + $0x48] sm:$0xff]
  %v44 = vld [vmem:[#allocation2 + $0x50] sm:$0xff]
  %v45 = vld [vmem:[#allocation2 + $0x58] sm:$0xff]
  %v46 = vld [vmem:[#allocation2 + $0x60] sm:$0xff]
  %v47 = vld [vmem:[#allocation2 + $0x68] sm:$0xff]
  %v48 = vld [vmem:[#allocation2 + $0x70] sm:$0xff]
  %v49 = vld [vmem:[#allocation2 + $0x78] sm:$0xff]
  %v50 = vld [vmem:[%s0] sm:$0xff]
  %v51 = vld [vmem:[%s0 + $0x8] sm:$0xf]
  %v52 = vld [vmem:[%s0 + $0xc] sm:$0xff]
  %v53 = vld [vmem:[%s0 + $0x14] sm:$0xf]
  %v54 = vld [vmem:[%s0 + $0x18] sm:$0xff]
  %v55 = vld [vmem:[%s0 + $0x20] sm:$0xf]
  %v56 = vld [vmem:[%s0 + $0x24] sm:$0xff]
  %v57 = vld [vmem:[%s0 + $0x2c] sm:$0xf]
  %v58 = vld [vmem:[%s0 + $0x30] sm:$0xff]
  %v59 = vld [vmem:[%s0 + $0x38] sm:$0xf]
  %v60 = vld [vmem:[%s0 + $0x3c] sm:$0xff]
  %v61 = vld [vmem:[%s0 + $0x44] sm:$0xf]
  %v62 = vld [vmem:[%s0 + $0x48] sm:$0xff]
  %v63 = vld [vmem:[%s0 + $0x50] sm:$0xf]
  %v64 = vld [vmem:[%s0 + $0x54] sm:$0xff]
  %v65 = vld [vmem:[%s0 + $0x5c] sm:$0xf]
  %v66 = vld [vmem:[%s0 + $0x60] sm:$0xff]
  %v67 = vld [vmem:[%s0 + $0x68] sm:$0xf]
  %v68 = vld [vmem:[%s0 + $0x6c] sm:$0xff]
  %v69 = vld [vmem:[%s0 + $0x74] sm:$0xf]
  %v70 = vld [vmem:[%s0 + $0x78] sm:$0xff]
  %v71 = vld [vmem:[%s0 + $0x80] sm:$0xf]
  %v72 = vld [vmem:[%s0 + $0x84] sm:$0xff]
  %v73 = vld [vmem:[%s0 + $0x8c] sm:$0xf]
  %v74 = vld [vmem:[%s0 + $0x90] sm:$0xff]
  %v75 = vld [vmem:[%s0 + $0x98] sm:$0xf]
  %v76 = vld [vmem:[%s0 + $0x9c] sm:$0xff]
  %v77 = vld [vmem:[%s0 + $0xa4] sm:$0xf]
  %v78 = vld [vmem:[%s0 + $0xa8] sm:$0xff]
  %v79 = vld [vmem:[%s0 + $0xb0] sm:$0xf]
  %v80 = vld [vmem:[%s0 + $0xb4] sm:$0xff]
  %v81 = vld [vmem:[%s0 + $0xbc] sm:$0xf]
  %v82 = vld [vmem:[%s1] sm:$0xf]
  %v83 = vld [vmem:[%s1 + $0x4] sm:$0xf]
  %v84 = vld [vmem:[%s1 + $0x8] sm:$0xf]
  %v85 = vld [vmem:[%s1 + $0xc] sm:$0xf]
  %v86 = vld [vmem:[%s1 + $0x10] sm:$0xf]
  %v87 = vld [vmem:[%s1 + $0x14] sm:$0xf]
  %v88 = vld [vmem:[%s1 + $0x18] sm:$0xf]
  %v89 = vld [vmem:[%s1 + $0x1c] sm:$0xf]
  %v90 = vld [vmem:[%s1 + $0x20] sm:$0xf]
  %v91 = vld [vmem:[%s1 + $0x24] sm:$0xf]
  %v92 = vld [vmem:[%s1 + $0x28] sm:$0xf]
  %v93 = vld [vmem:[%s1 + $0x2c] sm:$0xf]
  %v94 = vld [vmem:[%s1 + $0x30] sm:$0xf]
  %v95 = vld [vmem:[%s1 + $0x34] sm:$0xf]
  %v96 = vld [vmem:[%s1 + $0x38] sm:$0xf]
  %v97 = vld [vmem:[%s1 + $0x3c] sm:$0xf]
  %v98 = vld [vmem:[%s1 + $0x40] sm:$0xf]
  %v99 = vld [vmem:[%s1 + $0x44] sm:$0xf]
  %v100 = vld [vmem:[%s1 + $0x48] sm:$0xf]
  %v101 = vld [vmem:[%s1 + $0x4c] sm:$0xf]
  %v102 = vld [vmem:[%s1 + $0x50] sm:$0xf]
  %v103 = vld [vmem:[%s1 + $0x54] sm:$0xf]
  %v104 = vld [vmem:[%s1 + $0x58] sm:$0xf]
  %v105 = vld [vmem:[%s1 + $0x5c] sm:$0xf]
  %v106 = vld [vmem:[%s1 + $0x60] sm:$0xf]
  %v107 = vld [vmem:[%s1 + $0x64] sm:$0xf]
  %v108 = vld [vmem:[%s1 + $0x68] sm:$0xf]
  %v109 = vld [vmem:[%s1 + $0x6c] sm:$0xf]
  %v110 = vld [vmem:[%s1 + $0x70] sm:$0xf]
  %v111 = vld [vmem:[%s1 + $0x74] sm:$0xf]
  %v112 = vld [vmem:[%s1 + $0x78] sm:$0xf]
  %v113 = vld [vmem:[%s1 + $0x7c] sm:$0xf]
  %v114 = vld [vmem:[%s1 + $0x80] sm:$0xf]
  %v115 = vld [vmem:[%s1 + $0x84] sm:$0xf]
  %v116 = vld [vmem:[%s1 + $0x88] sm:$0xf]
  %v117 = vld [vmem:[%s1 + $0x8c] sm:$0xf]
  %v118 = vld [vmem:[%s1 + $0x90] sm:$0xf]
  %v119 = vld [vmem:[%s1 + $0x94] sm:$0xf]
  %v120 = vld [vmem:[%s1 + $0x98] sm:$0xf]
  %v121 = vld [vmem:[%s1 + $0x9c] sm:$0xf]
  %v122 = vld [vmem:[%s1 + $0xa0] sm:$0xf]
  %v123 = vld [vmem:[%s1 + $0xa4] sm:$0xf]
  %v124 = vld [vmem:[%s1 + $0xa8] sm:$0xf]
  %v125 = vld [vmem:[%s1 + $0xac] sm:$0xf]
  %v126 = vld [vmem:[%s1 + $0xb0] sm:$0xf]
  %v127 = vld [vmem:[%s1 + $0xb4] sm:$0xf]
  %v128 = vld [vmem:[%s1 + $0xb8] sm:$0xf]
  %v129 = vld [vmem:[%s1 + $0xbc] sm:$0xf]
  %v162 = vunpack.c.l.b16 %v50
  %v163 = vunpack.c.h.b16 %v50
  %v164 = vunpack.c.l.b16 %v51
  %v165 = vunpack.c.l.b16 %v52
  %v166 = vunpack.c.h.b16 %v52
  %v167 = vunpack.c.l.b16 %v53
  %v168 = vunpack.c.l.b16 %v54
  %v169 = vunpack.c.h.b16 %v54
  %v170 = vunpack.c.l.b16 %v55
  %v171 = vunpack.c.l.b16 %v56
  %v172 = vunpack.c.h.b16 %v56
  %v173 = vunpack.c.l.b16 %v57
  %v174 = vunpack.c.l.b16 %v58
  %v175 = vunpack.c.h.b16 %v58
  %v176 = vunpack.c.l.b16 %v59
  %v177 = vunpack.c.l.b16 %v60
  %v178 = vunpack.c.h.b16 %v60
  %v179 = vunpack.c.l.b16 %v61
  %v180 = vunpack.c.l.b16 %v62
  %v181 = vunpack.c.h.b16 %v62
  %v182 = vunpack.c.l.b16 %v63
  %v183 = vunpack.c.l.b16 %v64
  %v184 = vunpack.c.h.b16 %v64
  %v185 = vunpack.c.l.b16 %v65
  %v186 = vunpack.c.l.b16 %v66
  %v187 = vunpack.c.h.b16 %v66
  %v188 = vunpack.c.l.b16 %v67
  %v189 = vunpack.c.l.b16 %v68
  %v190 = vunpack.c.h.b16 %v68
  %v191 = vunpack.c.l.b16 %v69
  %v192 = vunpack.c.l.b16 %v70
  %v193 = vunpack.c.h.b16 %v70
  %v194 = vunpack.c.l.b16 %v71
  %v195 = vunpack.c.l.b16 %v72
  %v196 = vunpack.c.h.b16 %v72
  %v197 = vunpack.c.l.b16 %v73
  %v198 = vunpack.c.l.b16 %v74
  %v199 = vunpack.c.h.b16 %v74
  %v200 = vunpack.c.l.b16 %v75
  %v201 = vunpack.c.l.b16 %v76
  %v202 = vunpack.c.h.b16 %v76
  %v203 = vunpack.c.l.b16 %v77
  %v204 = vunpack.c.l.b16 %v78
  %v205 = vunpack.c.h.b16 %v78
  %v206 = vunpack.c.l.b16 %v79
  %v207 = vunpack.c.l.b16 %v80
  %v208 = vunpack.c.h.b16 %v80
  %v209 = vunpack.c.l.b16 %v81
  %v210 = vpack.c.b16 %v165, %v162
  %v211 = vpack.c.b16 %v166, %v163
  %v212 = vpack.c.b16 %v167, %v164
  %v213 = vpack.c.b16 %v171, %v168
  %v214 = vpack.c.b16 %v172, %v169
  %v215 = vpack.c.b16 %v173, %v170
  %v216 = vpack.c.b16 %v177, %v174
  %v217 = vpack.c.b16 %v178, %v175
  %v218 = vpack.c.b16 %v179, %v176
  %v219 = vpack.c.b16 %v183, %v180
  %v220 = vpack.c.b16 %v184, %v181
  %v221 = vpack.c.b16 %v185, %v182
  %v222 = vpack.c.b16 %v189, %v186
  %v223 = vpack.c.b16 %v190, %v187
  %v224 = vpack.c.b16 %v191, %v188
  %v225 = vpack.c.b16 %v195, %v192
  %v226 = vpack.c.b16 %v196, %v193
  %v227 = vpack.c.b16 %v197, %v194
  %v228 = vpack.c.b16 %v201, %v198
  %v229 = vpack.c.b16 %v202, %v199
  %v230 = vpack.c.b16 %v203, %v200
  %v231 = vpack.c.b16 %v207, %v204
  %v232 = vpack.c.b16 %v208, %v205
  %v233 = vpack.c.b16 %v209, %v206
  %v306 = vunpack.c.l.b16 %v82
  %v307 = vunpack.c.l.b16 %v83
  %v308 = vunpack.c.l.b16 %v84
  %v309 = vunpack.c.l.b16 %v85
  %v310 = vunpack.c.l.b16 %v86
  %v311 = vunpack.c.l.b16 %v87
  %v312 = vunpack.c.l.b16 %v88
  %v313 = vunpack.c.l.b16 %v89
  %v314 = vunpack.c.l.b16 %v90
  %v315 = vunpack.c.l.b16 %v91
  %v316 = vunpack.c.l.b16 %v92
  %v317 = vunpack.c.l.b16 %v93
  %v318 = vunpack.c.l.b16 %v94
  %v319 = vunpack.c.l.b16 %v95
  %v320 = vunpack.c.l.b16 %v96
  %v321 = vunpack.c.l.b16 %v97
  %v322 = vunpack.c.l.b16 %v98
  %v323 = vunpack.c.l.b16 %v99
  %v324 = vunpack.c.l.b16 %v100
  %v325 = vunpack.c.l.b16 %v101
  %v326 = vunpack.c.l.b16 %v102
  %v327 = vunpack.c.l.b16 %v103
  %v328 = vunpack.c.l.b16 %v104
  %v329 = vunpack.c.l.b16 %v105
  %v330 = vunpack.c.l.b16 %v106
  %v331 = vunpack.c.l.b16 %v107
  %v332 = vunpack.c.l.b16 %v108
  %v333 = vunpack.c.l.b16 %v109
  %v334 = vunpack.c.l.b16 %v110
  %v335 = vunpack.c.l.b16 %v111
  %v336 = vunpack.c.l.b16 %v112
  %v337 = vunpack.c.l.b16 %v113
  %v338 = vunpack.c.l.b16 %v114
  %v339 = vunpack.c.l.b16 %v115
  %v340 = vunpack.c.l.b16 %v116
  %v341 = vunpack.c.l.b16 %v117
  %v342 = vunpack.c.l.b16 %v118
  %v343 = vunpack.c.l.b16 %v119
  %v344 = vunpack.c.l.b16 %v120
  %v345 = vunpack.c.l.b16 %v121
  %v346 = vunpack.c.l.b16 %v122
  %v347 = vunpack.c.l.b16 %v123
  %v348 = vunpack.c.l.b16 %v124
  %v349 = vunpack.c.l.b16 %v125
  %v350 = vunpack.c.l.b16 %v126
  %v351 = vunpack.c.l.b16 %v127
  %v352 = vunpack.c.l.b16 %v128
  %v353 = vunpack.c.l.b16 %v129
  %v354 = vpack.c.b16 %v307, %v306
  %v355 = vpack.c.b16 %v309, %v308
  %v356 = vpack.c.b16 %v311, %v310
  %v357 = vpack.c.b16 %v313, %v312
  %v358 = vpack.c.b16 %v315, %v314
  %v359 = vpack.c.b16 %v317, %v316
  %v360 = vpack.c.b16 %v319, %v318
  %v361 = vpack.c.b16 %v321, %v320
  %v362 = vpack.c.b16 %v323, %v322
  %v363 = vpack.c.b16 %v325, %v324
  %v364 = vpack.c.b16 %v327, %v326
  %v365 = vpack.c.b16 %v329, %v328
  %v366 = vpack.c.b16 %v331, %v330
  %v367 = vpack.c.b16 %v333, %v332
  %v368 = vpack.c.b16 %v335, %v334
  %v369 = vpack.c.b16 %v337, %v336
  %v370 = vpack.c.b16 %v339, %v338
  %v371 = vpack.c.b16 %v341, %v340
  %v372 = vpack.c.b16 %v343, %v342
  %v373 = vpack.c.b16 %v345, %v344
  %v374 = vpack.c.b16 %v347, %v346
  %v375 = vpack.c.b16 %v349, %v348
  %v376 = vpack.c.b16 %v351, %v350
  %v377 = vpack.c.b16 %v353, %v352
  %402 = vmatpush.bf16.msra.mxu0 %v361
  %403 = vmatpush.bf16.msra.mxu0 %v360
  %404 = vmatpush.bf16.msra.mxu0 %v359
  %405 = vmatpush.bf16.msra.mxu0 %v358
  %406 = vmatpush.bf16.msra.mxu0 %v357
  %407 = vmatpush.bf16.msra.mxu0 %v356
  %408 = vmatpush.bf16.msra.mxu0 %v355
  %409 = vmatpush.bf16.msra.mxu0 %v354
  %410 = vmatmul.bf16.gmra.mxu0 %v210
  %v411 = vpop.f32.mrf.mxu0
  %v412 = vadd.f32 0.0, %v411
  %v413 = vpop.f32.mrf.mxu0
  %v414 = vadd.f32 0.0, %v413
  %415 = vmatmul.bf16.gmra.mxu0 %v213
  %v416 = vpop.f32.mrf.mxu0
  %v417 = vadd.f32 0.0, %v416
  %v418 = vpop.f32.mrf.mxu0
  %v419 = vadd.f32 0.0, %v418
  %420 = vmatmul.bf16.gmra.mxu0 %v216
  %v421 = vpop.f32.mrf.mxu0
  %v422 = vadd.f32 0.0, %v421
  %v423 = vpop.f32.mrf.mxu0
  %v424 = vadd.f32 0.0, %v423
  %425 = vmatmul.bf16.gmra.mxu0 %v219
  %v426 = vpop.f32.mrf.mxu0
  %v427 = vadd.f32 0.0, %v426
  %v428 = vpop.f32.mrf.mxu0
  %v429 = vadd.f32 0.0, %v428
  %430 = vmatmul.bf16.gmra.mxu0 %v222
  %v431 = vpop.f32.mrf.mxu0
  %v432 = vadd.f32 0.0, %v431
  %v433 = vpop.f32.mrf.mxu0
  %v434 = vadd.f32 0.0, %v433
  %435 = vmatmul.bf16.gmra.mxu0 %v225
  %v436 = vpop.f32.mrf.mxu0
  %v437 = vadd.f32 0.0, %v436
  %v438 = vpop.f32.mrf.mxu0
  %v439 = vadd.f32 0.0, %v438
  %440 = vmatmul.bf16.gmra.mxu0 %v228
  %v441 = vpop.f32.mrf.mxu0
  %v442 = vadd.f32 0.0, %v441
  %v443 = vpop.f32.mrf.mxu0
  %v444 = vadd.f32 0.0, %v443
  %445 = vmatmul.bf16.gmra.mxu0 %v231
  %v446 = vpop.f32.mrf.mxu0
  %v447 = vadd.f32 0.0, %v446
  %v448 = vpop.f32.mrf.mxu0
  %v449 = vadd.f32 0.0, %v448
  %450 = vdwg.mxu0
  %451 = vmatpush.bf16.msra.mxu0 %v369
  %452 = vmatpush.bf16.msra.mxu0 %v368
  %453 = vmatpush.bf16.msra.mxu0 %v367
  %454 = vmatpush.bf16.msra.mxu0 %v366
  %455 = vmatpush.bf16.msra.mxu0 %v365
  %456 = vmatpush.bf16.msra.mxu0 %v364
  %457 = vmatpush.bf16.msra.mxu0 %v363
  %458 = vmatpush.bf16.msra.mxu0 %v362
  %459 = vmatmul.bf16.gmra.mxu0 %v211
  %v460 = vpop.f32.mrf.mxu0
  %v461 = vadd.f32 %v412, %v460
  %v462 = vpop.f32.mrf.mxu0
  %v463 = vadd.f32 %v414, %v462
  %464 = vmatmul.bf16.gmra.mxu0 %v214
  %v465 = vpop.f32.mrf.mxu0
  %v466 = vadd.f32 %v417, %v465
  %v467 = vpop.f32.mrf.mxu0
  %v468 = vadd.f32 %v419, %v467
  %469 = vmatmul.bf16.gmra.mxu0 %v217
  %v470 = vpop.f32.mrf.mxu0
  %v471 = vadd.f32 %v422, %v470
  %v472 = vpop.f32.mrf.mxu0
  %v473 = vadd.f32 %v424, %v472
  %474 = vmatmul.bf16.gmra.mxu0 %v220
  %v475 = vpop.f32.mrf.mxu0
  %v476 = vadd.f32 %v427, %v475
  %v477 = vpop.f32.mrf.mxu0
  %v478 = vadd.f32 %v429, %v477
  %479 = vmatmul.bf16.gmra.mxu0 %v223
  %v480 = vpop.f32.mrf.mxu0
  %v481 = vadd.f32 %v432, %v480
  %v482 = vpop.f32.mrf.mxu0
  %v483 = vadd.f32 %v434, %v482
  %484 = vmatmul.bf16.gmra.mxu0 %v226
  %v485 = vpop.f32.mrf.mxu0
  %v486 = vadd.f32 %v437, %v485
  %v487 = vpop.f32.mrf.mxu0
  %v488 = vadd.f32 %v439, %v487
  %489 = vmatmul.bf16.gmra.mxu0 %v229
  %v490 = vpop.f32.mrf.mxu0
  %v491 = vadd.f32 %v442, %v490
  %v492 = vpop.f32.mrf.mxu0
  %v493 = vadd.f32 %v444, %v492
  %494 = vmatmul.bf16.gmra.mxu0 %v232
  %v495 = vpop.f32.mrf.mxu0
  %v496 = vadd.f32 %v447, %v495
  %v497 = vpop.f32.mrf.mxu0
  %v498 = vadd.f32 %v449, %v497
  %499 = vdwg.mxu0
  %500 = vmatpush.bf16.msra.mxu0 %v377
  %501 = vmatpush.bf16.msra.mxu0 %v376
  %502 = vmatpush.bf16.msra.mxu0 %v375
  %503 = vmatpush.bf16.msra.mxu0 %v374
  %504 = vmatpush.bf16.msra.mxu0 %v373
  %505 = vmatpush.bf16.msra.mxu0 %v372
  %506 = vmatpush.bf16.msra.mxu0 %v371
  %507 = vmatpush.bf16.msra.mxu0 %v370
  %508 = vmatmul.bf16.gmra.mxu0 %v212
  %v509 = vpop.f32.mrf.mxu0
  %v510 = vadd.f32 %v461, %v509
  %v511 = vpop.f32.mrf.mxu0
  %v512 = vadd.f32 %v463, %v511
  %513 = vmatmul.bf16.gmra.mxu0 %v215
  %v514 = vpop.f32.mrf.mxu0
  %v515 = vadd.f32 %v466, %v514
  %v516 = vpop.f32.mrf.mxu0
  %v517 = vadd.f32 %v468, %v516
  %518 = vmatmul.bf16.gmra.mxu0 %v218
  %v519 = vpop.f32.mrf.mxu0
  %v520 = vadd.f32 %v471, %v519
  %v521 = vpop.f32.mrf.mxu0
  %v522 = vadd.f32 %v473, %v521
  %523 = vmatmul.bf16.gmra.mxu0 %v221
  %v524 = vpop.f32.mrf.mxu0
  %v525 = vadd.f32 %v476, %v524
  %v526 = vpop.f32.mrf.mxu0
  %v527 = vadd.f32 %v478, %v526
  %528 = vmatmul.bf16.gmra.mxu0 %v224
  %v529 = vpop.f32.mrf.mxu0
  %v530 = vadd.f32 %v481, %v529
  %v531 = vpop.f32.mrf.mxu0
  %v532 = vadd.f32 %v483, %v531
  %533 = vmatmul.bf16.gmra.mxu0 %v227
  %v534 = vpop.f32.mrf.mxu0
  %v535 = vadd.f32 %v486, %v534
  %v536 = vpop.f32.mrf.mxu0
  %v537 = vadd.f32 %v488, %v536
  %538 = vmatmul.bf16.gmra.mxu0 %v230
  %v539 = vpop.f32.mrf.mxu0
  %v540 = vadd.f32 %v491, %v539
  %v541 = vpop.f32.mrf.mxu0
  %v542 = vadd.f32 %v493, %v541
  %543 = vmatmul.bf16.gmra.mxu0 %v233
  %v544 = vpop.f32.mrf.mxu0
  %v545 = vadd.f32 %v496, %v544
  %v546 = vpop.f32.mrf.mxu0
  %v547 = vadd.f32 %v498, %v546
  %548 = vdwg.mxu0
  %v549 = vadd.f32 %v34, %v510
  %v550 = vadd.f32 %v35, %v512
  %v551 = vadd.f32 %v36, %v515
  %v552 = vadd.f32 %v37, %v517
  %v553 = vadd.f32 %v38, %v520
  %v554 = vadd.f32 %v39, %v522
  %v555 = vadd.f32 %v40, %v525
  %v556 = vadd.f32 %v41, %v527
  %v557 = vadd.f32 %v42, %v530
  %v558 = vadd.f32 %v43, %v532
  %v559 = vadd.f32 %v44, %v535
  %v560 = vadd.f32 %v45, %v537
  %v561 = vadd.f32 %v46, %v540
  %v562 = vadd.f32 %v47, %v542
  %v563 = vadd.f32 %v48, %v545
  %v564 = vadd.f32 %v49, %v547
  %565 = vst [vmem:[#allocation2] sm:$0xff] %v549
  %566 = vst [vmem:[#allocation2 + $0x8] sm:$0xff] %v550
  %567 = vst [vmem:[#allocation2 + $0x10] sm:$0xff] %v551
  %568 = vst [vmem:[#allocation2 + $0x18] sm:$0xff] %v552
  %569 = vst [vmem:[#allocation2 + $0x20] sm:$0xff] %v553
  %570 = vst [vmem:[#allocation2 + $0x28] sm:$0xff] %v554
  %571 = vst [vmem:[#allocation2 + $0x30] sm:$0xff] %v555
  %572 = vst [vmem:[#allocation2 + $0x38] sm:$0xff] %v556
  %573 = vst [vmem:[#allocation2 + $0x40] sm:$0xff] %v557
  %574 = vst [vmem:[#allocation2 + $0x48] sm:$0xff] %v558
  %575 = vst [vmem:[#allocation2 + $0x50] sm:$0xff] %v559
  %576 = vst [vmem:[#allocation2 + $0x58] sm:$0xff] %v560
  %577 = vst [vmem:[#allocation2 + $0x60] sm:$0xff] %v561
  %578 = vst [vmem:[#allocation2 + $0x68] sm:$0xff] %v562
  %579 = vst [vmem:[#allocation2 + $0x70] sm:$0xff] %v563
  %580 = vst [vmem:[#allocation2 + $0x78] sm:$0xff] %v564
  // Predicated region
  $region18: #{fecnet_forward.4} parent=0 // pred_check
    %p581 = pneg %p14
  $region19: #{fecnet_forward.4} parent=0 // pred_check_branch
    %583 = sbr.rel (%p581) target = $region21
  $region20: #{fecnet_forward.4} parent=0 // pred_region
    %v584 = vld [vmem:[#allocation2] sm:$0xff]
    %v585 = vld [vmem:[#allocation2 + $0x8] sm:$0xff]
    %v586 = vld [vmem:[#allocation2 + $0x10] sm:$0xff]
    %v587 = vld [vmem:[#allocation2 + $0x18] sm:$0xff]
    %v588 = vld [vmem:[#allocation2 + $0x20] sm:$0xff]
    %v589 = vld [vmem:[#allocation2 + $0x28] sm:$0xff]
    %v590 = vld [vmem:[#allocation2 + $0x30] sm:$0xff]
    %v591 = vld [vmem:[#allocation2 + $0x38] sm:$0xff]
    %v592 = vld [vmem:[#allocation2 + $0x40] sm:$0xff]
    %v593 = vld [vmem:[#allocation2 + $0x48] sm:$0xff]
    %v594 = vld [vmem:[#allocation2 + $0x50] sm:$0xff]
    %v595 = vld [vmem:[#allocation2 + $0x58] sm:$0xff]
    %v596 = vld [vmem:[#allocation2 + $0x60] sm:$0xff]
    %v597 = vld [vmem:[#allocation2 + $0x68] sm:$0xff]
    %v598 = vld [vmem:[#allocation2 + $0x70] sm:$0xff]
    %v599 = vld [vmem:[#allocation2 + $0x78] sm:$0xff]
    %v600 = vld [vmem:[%s2] sm:$0x1]
    %v602 = vperm.slane %v600, 0
    %v604 = vadd.f32 %v584, %v602
    %v605 = vadd.f32 %v585, %v602
    %v606 = vadd.f32 %v586, %v602
    %v607 = vadd.f32 %v587, %v602
    %v608 = vadd.f32 %v588, %v602
    %v609 = vadd.f32 %v589, %v602
    %v610 = vadd.f32 %v590, %v602
    %v611 = vadd.f32 %v591, %v602
    %v612 = vadd.f32 %v592, %v602
    %v613 = vadd.f32 %v593, %v602
    %v614 = vadd.f32 %v594, %v602
    %v615 = vadd.f32 %v595, %v602
    %v616 = vadd.f32 %v596, %v602
    %v617 = vadd.f32 %v597, %v602
    %v618 = vadd.f32 %v598, %v602
    %v619 = vadd.f32 %v599, %v602
    %v620 = vmax.f32 %v604, 0.0
    %v621 = vmax.f32 %v605, 0.0
    %v622 = vmax.f32 %v606, 0.0
    %v623 = vmax.f32 %v607, 0.0
    %v624 = vmax.f32 %v608, 0.0
    %v625 = vmax.f32 %v609, 0.0
    %v626 = vmax.f32 %v610, 0.0
    %v627 = vmax.f32 %v611, 0.0
    %v628 = vmax.f32 %v612, 0.0
    %v629 = vmax.f32 %v613, 0.0
    %v630 = vmax.f32 %v614, 0.0
    %v631 = vmax.f32 %v615, 0.0
    %v632 = vmax.f32 %v616, 0.0
    %v633 = vmax.f32 %v617, 0.0
    %v634 = vmax.f32 %v618, 0.0
    %v635 = vmax.f32 %v619, 0.0
    %v636 = vpack.c.bf16 %v620, %v620
    %v637 = vpack.c.bf16 %v621, %v621
    %v638 = vpack.c.bf16 %v622, %v622
    %v639 = vpack.c.bf16 %v623, %v623
    %v640 = vpack.c.bf16 %v624, %v624
    %v641 = vpack.c.bf16 %v625, %v625
    %v642 = vpack.c.bf16 %v626, %v626
    %v643 = vpack.c.bf16 %v627, %v627
    %v644 = vpack.c.bf16 %v628, %v628
    %v645 = vpack.c.bf16 %v629, %v629
    %v646 = vpack.c.bf16 %v630, %v630
    %v647 = vpack.c.bf16 %v631, %v631
    %v648 = vpack.c.bf16 %v632, %v632
    %v649 = vpack.c.bf16 %v633, %v633
    %v650 = vpack.c.bf16 %v634, %v634
    %v651 = vpack.c.bf16 %v635, %v635
    %652 = vst [vmem:[%s3] sm:$0xf] %v636
    %653 = vst [vmem:[%s3 + $0x4] sm:$0xf] %v637
    %654 = vst [vmem:[%s3 + $0x8] sm:$0xf] %v638
    %655 = vst [vmem:[%s3 + $0xc] sm:$0xf] %v639
    %656 = vst [vmem:[%s3 + $0x10] sm:$0xf] %v640
    %657 = vst [vmem:[%s3 + $0x14] sm:$0xf] %v641
    %658 = vst [vmem:[%s3 + $0x18] sm:$0xf] %v642
    %659 = vst [vmem:[%s3 + $0x1c] sm:$0xf] %v643
    %660 = vst [vmem:[%s3 + $0x20] sm:$0xf] %v644
    %661 = vst [vmem:[%s3 + $0x24] sm:$0xf] %v645
    %662 = vst [vmem:[%s3 + $0x28] sm:$0xf] %v646
    %663 = vst [vmem:[%s3 + $0x2c] sm:$0xf] %v647
    %664 = vst [vmem:[%s3 + $0x30] sm:$0xf] %v648
    %665 = vst [vmem:[%s3 + $0x34] sm:$0xf] %v649
    %666 = vst [vmem:[%s3 + $0x38] sm:$0xf] %v650
    %667 = vst [vmem:[%s3 + $0x3c] sm:$0xf] %v651
  $region21: #{fecnet_forward.4} parent=0 // pred_fallthru
    _
  // Predicated region
  $region22: #{fecnet_forward.4} parent=0 // pred_check
    _
  $region23: #{fecnet_forward.4} parent=0 // pred_check_branch
    %669 = sbr.rel (0) target = $region25
  $region24: #{fecnet_forward.4} parent=0 // pred_region
    _
  $region25: #{fecnet_forward.4} parent=0 // pred_fallthru
    _
  // Predicated region
  $region26: #{fecnet_forward.4} parent=0 // pred_check
    _
  $region27: #{fecnet_forward.4} parent=0 // pred_check_branch
    %671 = sbr.rel (0) target = $region29
  $region28: #{fecnet_forward.4} parent=0 // pred_region
    _
  $region29: #{fecnet_forward.4} parent=0 // pred_fallthru
    _

// kernel: fecnet_forward.5
$region0: #{fecnet_forward.5}
  #allocation0 [shape = 'u32[]', space=smem, size = 0x4, offset = 0x4, fixed_abs, tag = 'smem constant byte address 0x4 - core index']
  #allocation1 [shape = 'u32[72,128]{1,0:T(1,128)}', space=vmem, size = 0x9000, scoped, tag = 'internal scratch']
  #allocation2 [shape = 'f32[8,128]{1,0:T(8,128)}', space=vmem, size = 0x1000, scoped, tag = 'scratch operand']
  %s0 = inlined_call_operand.vmem [shape: bf16[2,64,128], index: 0, kind: input, shape index: {}]
  %s1 = inlined_call_operand.vmem [shape: bf16[128,128], index: 1, kind: input, shape index: {}]
  %s2 = inlined_call_operand.vmem [shape: f32[1,128], index: 2, kind: input, shape index: {}]
  %s3 = inlined_call_operand.vmem [shape: bf16[128,128], index: 3, kind: input, shape index: {}]
  %s4 = inlined_call_operand.vmem [shape: f32[1,128], index: 4, kind: input, shape index: {}]
  %s5 = inlined_call_operand.hbm [shape: f32[2,1,128], index: 5, kind: output, shape index: {}]
  %s6 = sld [smem:[#allocation0]]
  $region61: #{fecnet_forward.5} parent=0
    _
  %s8 = ssub.s32 1, %s6
  %s9 = scalar_select 0, %s8, %s6
  $region1: #{fecnet_forward.5} parent=0
    #allocation3 [shape = 'u8[1024]{0}', space=vmem, size = 0x400, scoped, tag = 'output window, operand 0']
    #allocation4 [shape = 's32[2]{0}', space=sflag, size = 0x8, scoped, tag = 'scoped memory for fecnet_forward.5']
    %10 = vsyncpa [#allocation4], 0
    %s11 = scalar_lea.sflag [#allocation4], 1
    %12 = vsyncpa %s11, 0
    loop: start=0, step=1, limit=4
    $region2: #{fecnet_forward.5} parent=1 // loop_pre_header
      _
    $region3: #{fecnet_forward.5} parent=1 // loop_header
      %s14 = sphi 0, %s18
      %p15 = scmp.ge.s32.totalorder %s14, 4
      %s21 = sphi 0, %s33
      %s22 = sphi 0, %s29
      %s23 = sphi 0, %s21
      %s24 = sphi 0, %s22
      %s25 = sphi 0, %s23
      %s26 = sphi 0, %s24
      %s38 = sphi 0, %s40
      %s41 = sphi 0, %s38
      %s42 = sphi 0, %s41
      %s58 = sphi 0, %s42
      %s62 = sphi 0, %s62
      %s64 = sphi 0, %s62
      %s65 = sphi 0, %s64
      %s79 = sphi 0, %s65
      %s83 = sphi 0, %s83
      %s85 = sphi 0, %s83
      %s86 = sphi 0, %s85
      %s100 = sphi 0, %s86
      %s104 = sphi 0, %s104
      %s106 = sphi 0, %s104
      %s107 = sphi 0, %s106
      %s121 = sphi 0, %s107
      %s125 = sphi 0, %s125
      %s127 = sphi 0, %s125
      %s128 = sphi 0, %s127
      %s142 = sphi 0, %s128
      %s148 = sphi 0, %s150
      %s151 = sphi 0, %s148
      %s152 = sphi 0, %s151
      %s168 = sphi 0, %s152
    $region4: #{fecnet_forward.5} parent=1 // loop_header_branch
      %17 = sbr.rel (%p15) target = $region8
    $region5: #{fecnet_forward.5} parent=1 // loop_body
      %s19 = ssub.s32 %s14, 1
      %s20 = ssub.s32 %s14, 2
      %s27 = sadd.s32 1, %s22
      %p28 = scmp.ge.s32.totalorder %s27, 1
      %s29 = scalar_select %p28, 0, %s27
      %s30 = sadd.s32 1, %s21
      %s31 = scalar_select %p28, %s30, %s21
      %p32 = scmp.ge.s32.totalorder %s31, 2
      %s33 = scalar_select %p32, 0, %s31
      %s34 = ssub.s32 %s21, %s33
      %s35 = ssub.s32 %s22, %s29
      %s36 = sor.u32 %s34, %s35
      %p37 = scmp.eq.s32.totalorder %s36, 0
      %s39 = sadd.s32 %s38, 1
      %s40 = scalar_select %p37, %s38, %s39
      %p43 = pneg %p37
      %p44 = scmp.eq.s32.totalorder %s14, 1
      %p45 = por %p43, %p44
      %p46 = scmp.ne.s32.totalorder %s38, %s41
      %p47 = scmp.eq.s32.totalorder %s14, 0
      %p48 = por %p46, %p47
      %p49 = scmp.ne.s32.totalorder %s38, %s41
      %p50 = scmp.eq.s32.totalorder %s19, 1
      %p51 = por %p49, %p50
      %p52 = scmp.ne.s32.totalorder %s41, %s42
      %p53 = scmp.eq.s32.totalorder %s19, 0
      %p54 = por %p52, %p53
      %p55 = scmp.ne.s32.totalorder %s41, %s42
      %p56 = scmp.eq.s32.totalorder %s20, 1
      %p57 = por %p55, %p56
      %p59 = scmp.ne.s32.totalorder %s42, %s58
      %p60 = scmp.eq.s32.totalorder %s20, 0
      %p61 = por %p59, %p60
      %s63 = sadd.s32 %s62, 1
      %p66 = scmp.eq.s32.totalorder %s14, 1
      %p67 = scmp.ne.s32.totalorder %s62, %s64
      %p68 = scmp.eq.s32.totalorder %s14, 0
      %p69 = por %p67, %p68
      %p70 = scmp.ne.s32.totalorder %s62, %s64
      %p71 = scmp.eq.s32.totalorder %s19, 1
      %p72 = por %p70, %p71
      %p73 = scmp.ne.s32.totalorder %s64, %s65
      %p74 = scmp.eq.s32.totalorder %s19, 0
      %p75 = por %p73, %p74
      %p76 = scmp.ne.s32.totalorder %s64, %s65
      %p77 = scmp.eq.s32.totalorder %s20, 1
      %p78 = por %p76, %p77
      %p80 = scmp.ne.s32.totalorder %s65, %s79
      %p81 = scmp.eq.s32.totalorder %s20, 0
      %p82 = por %p80, %p81
      %s84 = sadd.s32 %s83, 1
      %p87 = scmp.eq.s32.totalorder %s14, 1
      %p88 = scmp.ne.s32.totalorder %s83, %s85
      %p89 = scmp.eq.s32.totalorder %s14, 0
      %p90 = por %p88, %p89
      %p91 = scmp.ne.s32.totalorder %s83, %s85
      %p92 = scmp.eq.s32.totalorder %s19, 1
      %p93 = por %p91, %p92
      %p94 = scmp.ne.s32.totalorder %s85, %s86
      %p95 = scmp.eq.s32.totalorder %s19, 0
      %p96 = por %p94, %p95
      %p97 = scmp.ne.s32.totalorder %s85, %s86
      %p98 = scmp.eq.s32.totalorder %s20, 1
      %p99 = por %p97, %p98
      %p101 = scmp.ne.s32.totalorder %s86, %s100
      %p102 = scmp.eq.s32.totalorder %s20, 0
      %p103 = por %p101, %p102
      %s105 = sadd.s32 %s104, 1
      %p108 = scmp.eq.s32.totalorder %s14, 1
      %p109 = scmp.ne.s32.totalorder %s104, %s106
      %p110 = scmp.eq.s32.totalorder %s14, 0
      %p111 = por %p109, %p110
      %p112 = scmp.ne.s32.totalorder %s104, %s106
      %p113 = scmp.eq.s32.totalorder %s19, 1
      %p114 = por %p112, %p113
      %p115 = scmp.ne.s32.totalorder %s106, %s107
      %p116 = scmp.eq.s32.totalorder %s19, 0
      %p117 = por %p115, %p116
      %p118 = scmp.ne.s32.totalorder %s106, %s107
      %p119 = scmp.eq.s32.totalorder %s20, 1
      %p120 = por %p118, %p119
      %p122 = scmp.ne.s32.totalorder %s107, %s121
      %p123 = scmp.eq.s32.totalorder %s20, 0
      %p124 = por %p122, %p123
      %s126 = sadd.s32 %s125, 1
      %p129 = scmp.eq.s32.totalorder %s14, 1
      %p130 = scmp.ne.s32.totalorder %s125, %s127
      %p131 = scmp.eq.s32.totalorder %s14, 0
      %p132 = por %p130, %p131
      %p133 = scmp.ne.s32.totalorder %s125, %s127
      %p134 = scmp.eq.s32.totalorder %s19, 1
      %p135 = por %p133, %p134
      %p136 = scmp.ne.s32.totalorder %s127, %s128
      %p137 = scmp.eq.s32.totalorder %s19, 0
      %p138 = por %p136, %p137
      %p139 = scmp.ne.s32.totalorder %s127, %s128
      %p140 = scmp.eq.s32.totalorder %s20, 1
      %p141 = por %p139, %p140
      %p143 = scmp.ne.s32.totalorder %s128, %s142
      %p144 = scmp.eq.s32.totalorder %s20, 0
      %p145 = por %p143, %p144
      %s146 = ssub.s32 %s21, %s33
      %p147 = scmp.eq.s32.totalorder %s146, 0
      %s149 = sadd.s32 %s148, 1
      %s150 = scalar_select %p147, %s148, %s149
      %p153 = pneg %p147
      %p154 = scmp.eq.s32.totalorder %s14, 1
      %p155 = por %p153, %p154
      %p156 = scmp.ne.s32.totalorder %s148, %s151
      %p157 = scmp.eq.s32.totalorder %s14, 0
      %p158 = por %p156, %p157
      %p159 = scmp.ne.s32.totalorder %s148, %s151
      %p160 = scmp.eq.s32.totalorder %s19, 1
      %p161 = por %p159, %p160
      %p162 = scmp.ne.s32.totalorder %s151, %s152
      %p163 = scmp.eq.s32.totalorder %s19, 0
      %p164 = por %p162, %p163
      %p165 = scmp.ne.s32.totalorder %s151, %s152
      %p166 = scmp.eq.s32.totalorder %s20, 1
      %p167 = por %p165, %p166
      %p169 = scmp.ne.s32.totalorder %s152, %s168
      %p170 = scmp.eq.s32.totalorder %s20, 0
      %p171 = por %p169, %p170
      %p172 = scmp.le.s32.totalorder 1, %s14
      %p173 = scmp.lt.s32.totalorder %s14, 3
      %p174 = pnand %p172, %p173
      %p175 = pneg %p174
      // Predicated region
      $region9: #{fecnet_forward.5} parent=5 // pred_check
        _
      $region10: #{fecnet_forward.5} parent=5 // pred_check_branch
        %177 = sbr.rel (%p174) target = $region12
      $region11: #{fecnet_forward.5} parent=5 // pred_region
        %s178 = ssub.s32 %s14, 1
        // Predicated region
        $region13: #{fecnet_forward.5} parent=11 // pred_check
          %p179 = pneg %p75
        $region14: #{fecnet_forward.5} parent=11 // pred_check_branch
          %181 = sbr.rel (%p179) target = $region16
        $region15: #{fecnet_forward.5} parent=11 // pred_region
          _
        $region16: #{fecnet_forward.5} parent=11 // pred_fallthru
          _
        // Predicated region
        $region17: #{fecnet_forward.5} parent=11 // pred_check
          %p182 = pneg %p96
        $region18: #{fecnet_forward.5} parent=11 // pred_check_branch
          %184 = sbr.rel (%p182) target = $region20
        $region19: #{fecnet_forward.5} parent=11 // pred_region
          _
        $region20: #{fecnet_forward.5} parent=11 // pred_fallthru
          _
        // Predicated region
        $region21: #{fecnet_forward.5} parent=11 // pred_check
          %p185 = pneg %p117
        $region22: #{fecnet_forward.5} parent=11 // pred_check_branch
          %187 = sbr.rel (%p185) target = $region24
        $region23: #{fecnet_forward.5} parent=11 // pred_region
          _
        $region24: #{fecnet_forward.5} parent=11 // pred_fallthru
          _
        // Predicated region
        $region25: #{fecnet_forward.5} parent=11 // pred_check
          %p188 = pneg %p138
        $region26: #{fecnet_forward.5} parent=11 // pred_check_branch
          %190 = sbr.rel (%p188) target = $region28
        $region27: #{fecnet_forward.5} parent=11 // pred_region
          _
        $region28: #{fecnet_forward.5} parent=11 // pred_fallthru
          _
      $region12: #{fecnet_forward.5} parent=5 // pred_fallthru
        _
      %p191 = scmp.lt.s32.totalorder %s14, 2
      // Predicated region
      $region29: #{fecnet_forward.5} parent=5 // pred_check
        %p192 = pneg %p191
      $region30: #{fecnet_forward.5} parent=5 // pred_check_branch
        %194 = sbr.rel (%p192) target = $region32
      $region31: #{fecnet_forward.5} parent=5 // pred_region
        // Predicated region
        $region33: #{fecnet_forward.5} parent=31 // pred_check
          %p195 = pneg %p48
        $region34: #{fecnet_forward.5} parent=31 // pred_check_branch
          %197 = sbr.rel (%p195) target = $region36
        $region35: #{fecnet_forward.5} parent=31 // pred_region
          %s198 = smul.u32 8, %s22
          %p199 = scmp.lt.s32.totalorder %s21, 1
          %s200 = scalar_select %p199, %s21, 1
          %p201 = scmp.lt.s32.totalorder %s198, 7
          %s202 = scalar_select %p201, %s198, 7
          %s203 = smul.addr %s200, 8
          %s204 = sadd.s32 %s202, %s203
          %s205 = smul.addr %s204, 4
          %s206 = scalar_lea.vmem %s0, %s205
          %s207 = smul.u32 8, %s22
        $region36: #{fecnet_forward.5} parent=31 // pred_fallthru
          _
      $region32: #{fecnet_forward.5} parent=5 // pred_fallthru
        _
      %p208 = scmp.le.s32.totalorder 1, %s14
      %p209 = scmp.lt.s32.totalorder %s14, 3
      %p210 = pnand %p208, %p209
      %p211 = pneg %p210
      // Predicated region
      $region37: #{fecnet_forward.5} parent=5 // pred_check
        _
      $region38: #{fecnet_forward.5} parent=5 // pred_check_branch
        %213 = sbr.rel (%p210) target = $region40
      $region39: #{fecnet_forward.5} parent=5 // pred_region
        %s214 = ssub.s32 %s14, 1
        %s215 = smul.u32 8, %s24
        %p216 = scmp.lt.s32.totalorder %s23, 1
        %s217 = scalar_select %p216, %s23, 1
        %p218 = scmp.lt.s32.totalorder %s215, 7
        %s219 = scalar_select %p218, %s215, 7
        %s220 = smul.addr %s217, 8
        %s221 = sadd.s32 %s219, %s220
        %s222 = smul.addr %s221, 4
        %s223 = scalar_lea.vmem %s0, %s222
        %p224 = pneg %p54
        %p225 = pneg %p51
        %p226 = pneg %p75
        %p227 = pneg %p72
        %p228 = pneg %p96
        %p229 = pneg %p93
        %p230 = pneg %p117
        %p231 = pneg %p114
        %p232 = pneg %p138
        %p233 = pneg %p135
        %p234 = pneg %p164
        %p235 = pneg %p161
        %s236 = sand.u32 %s151, 1
        %s237 = scalar_lea.sflag [#allocation4], %s236
        %s238 = sand.u32 %s151, 1
        %s239 = scalar_lea.vmem [#allocation3], %s238
        %s240 = smul.u32 8, %s24
        %p241 = scmp.lt.s32.totalorder %s23, 1
        %s242 = scalar_select %p241, %s23, 1
        %p243 = scmp.lt.s32.totalorder %s240, 7
        %s244 = scalar_select %p243, %s240, 7
        %s245 = smul.addr %s242, 8
        %s246 = sadd.s32 %s244, %s245
        %s247 = smul.addr %s246, 4
        %s248 = scalar_lea.vmem %s0, %s247
        %s249 = smul.u32 8, %s24
        %p250 = scmp.eq.s32.totalorder %s24, 0
        // Predicated region
        $region41: #{fecnet_forward.5} parent=39 // pred_check
          %p251 = pneg %p250
        $region42: #{fecnet_forward.5} parent=39 // pred_check_branch
          %253 = sbr.rel (%p251) target = $region44
        $region43: #{fecnet_forward.5} parent=39 // pred_region
          %254 = vst [vmem:[#allocation2] sm:$0xff] 0.0
        $region44: #{fecnet_forward.5} parent=39 // pred_fallthru
          _
        %v255 = vld [vmem:[%s248] sm:$0xf]
        %v256 = vld [vmem:[%s248 + $0x4] sm:$0xf]
        %v257 = vld [vmem:[%s248 + $0x8] sm:$0xf]
        %v258 = vld [vmem:[%s248 + $0xc] sm:$0xf]
        %v259 = vld [vmem:[%s248 + $0x10] sm:$0xf]
        %v260 = vld [vmem:[%s248 + $0x14] sm:$0xf]
        %v261 = vld [vmem:[%s248 + $0x18] sm:$0xf]
        %v262 = vld [vmem:[%s248 + $0x1c] sm:$0xf]
        %v263 = vld [vmem:[%s1] sm:$0xf]
        %v264 = vld [vmem:[%s1 + $0x4] sm:$0xf]
        %v265 = vld [vmem:[%s1 + $0x8] sm:$0xf]
        %v266 = vld [vmem:[%s1 + $0xc] sm:$0xf]
        %v267 = vld [vmem:[%s1 + $0x10] sm:$0xf]
        %v268 = vld [vmem:[%s1 + $0x14] sm:$0xf]
        %v269 = vld [vmem:[%s1 + $0x18] sm:$0xf]
        %v270 = vld [vmem:[%s1 + $0x1c] sm:$0xf]
        %v271 = vld [vmem:[%s1 + $0x20] sm:$0xf]
        %v272 = vld [vmem:[%s1 + $0x24] sm:$0xf]
        %v273 = vld [vmem:[%s1 + $0x28] sm:$0xf]
        %v274 = vld [vmem:[%s1 + $0x2c] sm:$0xf]
        %v275 = vld [vmem:[%s1 + $0x30] sm:$0xf]
        %v276 = vld [vmem:[%s1 + $0x34] sm:$0xf]
        %v277 = vld [vmem:[%s1 + $0x38] sm:$0xf]
        %v278 = vld [vmem:[%s1 + $0x3c] sm:$0xf]
        %v279 = vld [vmem:[%s2] sm:$0x1]
        %v281 = vperm.slane %v279, 0
        %v291 = vunpack.c.l.b16 %v255
        %v292 = vunpack.c.l.b16 %v256
        %v293 = vunpack.c.l.b16 %v257
        %v294 = vunpack.c.l.b16 %v258
        %v295 = vunpack.c.l.b16 %v259
        %v296 = vunpack.c.l.b16 %v260
        %v297 = vunpack.c.l.b16 %v261
        %v298 = vunpack.c.l.b16 %v262
        %v299 = vpack.c.b16 %v292, %v291
        %v300 = vpack.c.b16 %v294, %v293
        %v301 = vpack.c.b16 %v296, %v295
        %v302 = vpack.c.b16 %v298, %v297
        %v323 = vunpack.c.l.b16 %v263
        %v324 = vunpack.c.l.b16 %v264
        %v325 = vunpack.c.l.b16 %v265
        %v326 = vunpack.c.l.b16 %v266
        %v327 = vunpack.c.l.b16 %v267
        %v328 = vunpack.c.l.b16 %v268
        %v329 = vunpack.c.l.b16 %v269
        %v330 = vunpack.c.l.b16 %v270
        %v331 = vunpack.c.l.b16 %v271
        %v332 = vunpack.c.l.b16 %v272
        %v333 = vunpack.c.l.b16 %v273
        %v334 = vunpack.c.l.b16 %v274
        %v335 = vunpack.c.l.b16 %v275
        %v336 = vunpack.c.l.b16 %v276
        %v337 = vunpack.c.l.b16 %v277
        %v338 = vunpack.c.l.b16 %v278
        %v339 = vpack.c.b16 %v324, %v323
        %v340 = vpack.c.b16 %v326, %v325
        %v341 = vpack.c.b16 %v328, %v327
        %v342 = vpack.c.b16 %v330, %v329
        %v343 = vpack.c.b16 %v332, %v331
        %v344 = vpack.c.b16 %v334, %v333
        %v345 = vpack.c.b16 %v336, %v335
        %v346 = vpack.c.b16 %v338, %v337
        %355 = vmatpush.bf16.msra.mxu0 %v346
        %356 = vmatpush.bf16.msra.mxu0 %v345
        %357 = vmatpush.bf16.msra.mxu0 %v344
        %358 = vmatpush.bf16.msra.mxu0 %v343
        %359 = vmatpush.bf16.msra.mxu0 %v342
        %360 = vmatpush.bf16.msra.mxu0 %v341
        %361 = vmatpush.bf16.msra.mxu0 %v340
        %362 = vmatpush.bf16.msra.mxu0 %v339
        %363 = vmatmul.bf16.gmra.mxu0 %v299
        %v364 = vpop.f32.mrf.mxu0
        %v365 = vadd.f32 %v281, %v364
        %v366 = vpop.f32.mrf.mxu0
        %v367 = vadd.f32 %v281, %v366
        %368 = vmatmul.bf16.gmra.mxu0 %v300
        %v369 = vpop.f32.mrf.mxu0
        %v370 = vadd.f32 %v281, %v369
        %v371 = vpop.f32.mrf.mxu0
        %v372 = vadd.f32 %v281, %v371
        %373 = vmatmul.bf16.gmra.mxu0 %v301
        %v374 = vpop.f32.mrf.mxu0
        %v375 = vadd.f32 %v281, %v374
        %v376 = vpop.f32.mrf.mxu0
        %v377 = vadd.f32 %v281, %v376
        %378 = vmatmul.bf16.gmra.mxu0 %v302
        %v379 = vpop.f32.mrf.mxu0
        %v380 = vadd.f32 %v281, %v379
        %v381 = vpop.f32.mrf.mxu0
        %v382 = vadd.f32 %v281, %v381
        %383 = vdwg.mxu0
        %v384 = vmax.f32 %v365, 0.0
        %v385 = vmax.f32 %v367, 0.0
        %v386 = vmax.f32 %v370, 0.0
        %v387 = vmax.f32 %v372, 0.0
        %v388 = vmax.f32 %v375, 0.0
        %v389 = vmax.f32 %v377, 0.0
        %v390 = vmax.f32 %v380, 0.0
        %v391 = vmax.f32 %v382, 0.0
        %v392 = vld [vmem:[#allocation2] sm:$0xff]
        %v393 = vadd.f32 %v384, %v385
        %v394 = vadd.f32 %v393, %v386
        %v395 = vadd.f32 %v394, %v387
        %v396 = vadd.f32 %v395, %v388
        %v397 = vadd.f32 %v396, %v389
        %v398 = vadd.f32 %v397, %v390
        %v399 = vadd.f32 %v398, %v391
        %v400 = vadd.f32 %v392, %v399
        %401 = vst [vmem:[#allocation2] sm:$0xff] %v400
        // Predicated region
        $region45: #{fecnet_forward.5} parent=39 // pred_check
          %p402 = pneg %p250
        $region46: #{fecnet_forward.5} parent=39 // pred_check_branch
          %404 = sbr.rel (%p402) target = $region48
        $region47: #{fecnet_forward.5} parent=39 // pred_region
          %v405 = vld [vmem:[#allocation2] sm:$0xff]
          %v406 = vrot.slane %v405, 4
          %v407 = vadd.f32 %v405, %v406
          %v408 = vrot.slane %v407, 2
          %v409 = vadd.f32 %v407, %v408
          %v410 = vrot.slane %v409, 1
          %v411 = vadd.f32 %v409, %v410
          %v412 = vmul.f32 %v411, 0.015625
          %v413 = vpack.c.bf16 %v412, %v412
          %v414 = vld [vmem:[%s3] sm:$0xf]
          %v415 = vld [vmem:[%s3 + $0x4] sm:$0xf]
          %v416 = vld [vmem:[%s3 + $0x8] sm:$0xf]
          %v417 = vld [vmem:[%s3 + $0xc] sm:$0xf]
          %v418 = vld [vmem:[%s3 + $0x10] sm:$0xf]
          %v419 = vld [vmem:[%s3 + $0x14] sm:$0xf]
          %v420 = vld [vmem:[%s3 + $0x18] sm:$0xf]
          %v421 = vld [vmem:[%s3 + $0x1c] sm:$0xf]
          %v422 = vld [vmem:[%s3 + $0x20] sm:$0xf]
          %v423 = vld [vmem:[%s3 + $0x24] sm:$0xf]
          %v424 = vld [vmem:[%s3 + $0x28] sm:$0xf]
          %v425 = vld [vmem:[%s3 + $0x2c] sm:$0xf]
          %v426 = vld [vmem:[%s3 + $0x30] sm:$0xf]
          %v427 = vld [vmem:[%s3 + $0x34] sm:$0xf]
          %v428 = vld [vmem:[%s3 + $0x38] sm:$0xf]
          %v429 = vld [vmem:[%s3 + $0x3c] sm:$0xf]
          %v430 = vld [vmem:[%s4] sm:$0x1]
          %v447 = vunpack.c.l.b16 %v414
          %v448 = vunpack.c.l.b16 %v415
          %v449 = vunpack.c.l.b16 %v416
          %v450 = vunpack.c.l.b16 %v417
          %v451 = vunpack.c.l.b16 %v418
          %v452 = vunpack.c.l.b16 %v419
          %v453 = vunpack.c.l.b16 %v420
          %v454 = vunpack.c.l.b16 %v421
          %v455 = vunpack.c.l.b16 %v422
          %v456 = vunpack.c.l.b16 %v423
          %v457 = vunpack.c.l.b16 %v424
          %v458 = vunpack.c.l.b16 %v425
          %v459 = vunpack.c.l.b16 %v426
          %v460 = vunpack.c.l.b16 %v427
          %v461 = vunpack.c.l.b16 %v428
          %v462 = vunpack.c.l.b16 %v429
          %v463 = vpack.c.b16 %v448, %v447
          %v464 = vpack.c.b16 %v450, %v449
          %v465 = vpack.c.b16 %v452, %v451
          %v466 = vpack.c.b16 %v454, %v453
          %v467 = vpack.c.b16 %v456, %v455
          %v468 = vpack.c.b16 %v458, %v457
          %v469 = vpack.c.b16 %v460, %v459
          %v470 = vpack.c.b16 %v462, %v461
          %479 = vmatpush.bf16.msra.mxu0 %v470
          %480 = vmatpush.bf16.msra.mxu0 %v469
          %481 = vmatpush.bf16.msra.mxu0 %v468
          %482 = vmatpush.bf16.msra.mxu0 %v467
          %483 = vmatpush.bf16.msra.mxu0 %v466
          %484 = vmatpush.bf16.msra.mxu0 %v465
          %485 = vmatpush.bf16.msra.mxu0 %v464
          %486 = vmatpush.bf16.msra.mxu0 %v463
          %487 = vmatmul.bf16.gmra.mxu0 %v413
          %v488 = vpop.f32.mrf.mxu0
          %v489 = vadd.f32 %v430, %v488
          %v490 = vpop.f32.mrf.mxu0
          %491 = vdwg.mxu0
          %492 = vst [vmem:[%s239] sm:$0x1] %v489
        $region48: #{fecnet_forward.5} parent=39 // pred_fallthru
          _
        %s493 = sand.u32 %s151, 1
        %s494 = scalar_lea.sflag [#allocation4], %s493
        %s495 = sand.u32 %s151, 1
        %s496 = scalar_lea.vmem [#allocation3], %s495
        // Predicated region
        $region49: #{fecnet_forward.5} parent=39 // pred_check
          %p497 = pneg %p161
        $region50: #{fecnet_forward.5} parent=39 // pred_check_branch
          %499 = sbr.rel (%p497) target = $region52
        $region51: #{fecnet_forward.5} parent=39 // pred_region
          %501 = vsyncadd %s494, 0
          %s502 = scalar_lea.hbm %s5, %s23
          %s504 = sshll.u32 %s496, 4
          %s505 = int_to_ptr.vmem [resolvable:$true] %s504
          %s506 = sshll.u32 %s502, 4
          %s507 = int_to_ptr.hbm [resolvable:$true] %s506
          %509 = dma.vmem_to_hbm [thread:$0]  %s505, 16, %s507, %s494
        $region52: #{fecnet_forward.5} parent=39 // pred_fallthru
          _
      $region40: #{fecnet_forward.5} parent=5 // pred_fallthru
        _
      %p510 = scmp.le.s32.totalorder 2, %s14
      // Predicated region
      $region53: #{fecnet_forward.5} parent=5 // pred_check
        %p511 = pneg %p510
      $region54: #{fecnet_forward.5} parent=5 // pred_check_branch
        %513 = sbr.rel (%p511) target = $region56
      $region55: #{fecnet_forward.5} parent=5 // pred_region
        %s514 = ssub.s32 %s14, 2
        // Predicated region
        $region57: #{fecnet_forward.5} parent=55 // pred_check
          %p515 = pneg %p167
        $region58: #{fecnet_forward.5} parent=55 // pred_check_branch
          %517 = sbr.rel (%p515) target = $region60
        $region59: #{fecnet_forward.5} parent=55 // pred_region
          %s518 = sand.u32 %s152, 1
          %s519 = scalar_lea.sflag [#allocation4], %s518
          %s520 = sand.u32 %s152, 1
          %s521 = scalar_lea.vmem [#allocation3], %s520
          %523 = dma.done %s519, 16
        $region60: #{fecnet_forward.5} parent=55 // pred_fallthru
          _
      $region56: #{fecnet_forward.5} parent=5 // pred_fallthru
        _
    $region6: #{fecnet_forward.5} parent=1 // loop_footer
      %s18 = sadd.s32 1, %s14
    $region7: #{fecnet_forward.5} parent=1 // loop_footer_branch
      %13 = sbr.rel target = $region3
    $region8: #{fecnet_forward.5} parent=1 // loop_exit
      _
    %524 = vsyncpa [#allocation4], 1
    %s525 = scalar_lea.sflag [#allocation4], 1
    %526 = vsyncpa %s525, 1

</llo_original>
